<compile_context>
chip_gen: v7x
topology: tpu7x:2x2x1
jax: 0.10.0
libtpu: 0.0.40
codegen_flags: <defaults>
</compile_context>

<pallas_src>
import functools

import jax
import jax.numpy as jnp
from jax.experimental import pallas as pl
from jax.experimental.pallas import tpu as pltpu

_LANES = 128
_MAX_TILE_ROWS = 512  # 512 x 128 f32 tile = 256 KiB; well inside VMEM on all gens


def _poisson_kernel(x_ref, u_ref, z_ref, o_ref, *, gain, normalize, max_k, lam_switch):
    lam = x_ref[...].astype(jnp.float32) * (1.0 / gain)
    scale = jnp.float32(gain if normalize else 1.0)

    def small_path():
        # Poisson inversion by sequential search (exact up to max_k truncation).
        u = u_ref[...]
        p = jnp.exp(-lam)          # pmf(0)
        cdf = p
        k = jnp.zeros_like(lam)
        for i in range(1, max_k + 1):
            k = k + (u > cdf).astype(jnp.float32)
            p = p * (lam * (1.0 / float(i)))   # 1/i folded to a constant
            cdf = cdf + p
        return k

    def big_path():
        # Gaussian approximation: round(lam + sqrt(lam) * z), clamped at 0.
        z = z_ref[...]
        return jnp.maximum(jnp.floor(lam + jnp.sqrt(lam) * z + 0.5), 0.0)

    lam_min = jnp.min(lam)
    lam_max = jnp.max(lam)

    @pl.when(lam_max <= lam_switch)          # whole tile small-lambda
    def _():
        o_ref[...] = (small_path() * scale).astype(o_ref.dtype)

    @pl.when(lam_min > lam_switch)           # whole tile large-lambda
    def _():
        o_ref[...] = (big_path() * scale).astype(o_ref.dtype)

    @pl.when(jnp.logical_and(lam_min <= lam_switch, lam_max > lam_switch))  # mixed
    def _():
        y = jnp.where(lam > lam_switch, big_path(), small_path())
        o_ref[...] = (y * scale).astype(o_ref.dtype)


def poisson_noise(x, seed, *, gain=1.0, normalize=True, max_k=36, lam_switch=12.0):
    """Apply Poisson noise to `x` (any shape). Returns float32 with x's shape."""
    orig_shape = x.shape
    flat = x.reshape(-1).astype(jnp.float32)
    n = flat.size

    rows = pl.cdiv(n, _LANES)
    rows8 = ((rows + 7) // 8) * 8            # sublane-align
    tile_r = min(_MAX_TILE_ROWS, rows8)
    n_tiles = (rows8 + tile_r - 1) // tile_r
    rows_pad = n_tiles * tile_r

    pad = rows_pad * _LANES - n
    if pad:                                   # tail-only pad; skipped when aligned
        flat = jnp.pad(flat, (0, pad))
    x2 = flat.reshape(rows_pad, _LANES)

    # Random draws generated outside the kernel (one uniform + one normal per
    # element); the kernel applies the sampling transform.
    key = jax.random.PRNGKey(seed)
    ku, kz = jax.random.split(key)
    u = jax.random.uniform(ku, (rows_pad, _LANES), dtype=jnp.float32)
    z = jax.random.normal(kz, (rows_pad, _LANES), dtype=jnp.float32)

    kernel = functools.partial(
        _poisson_kernel,
        gain=float(gain),
        normalize=bool(normalize),
        max_k=int(max_k),
        lam_switch=float(lam_switch),
    )

    spec = pl.BlockSpec((tile_r, _LANES), lambda i: (i, 0))
    out = pl.pallas_call(
        kernel,
        out_shape=jax.ShapeDtypeStruct((rows_pad, _LANES), jnp.float32),
        grid=(n_tiles,),
        in_specs=[spec, spec, spec],
        out_specs=spec,
        compiler_params=pltpu.CompilerParams(
            dimension_semantics=("parallel",),      # elementwise: shard across TCs
            vmem_limit_bytes=32 * 1024 * 1024,
        ),
    )(x2, u, z)

    return out.reshape(-1)[:n].reshape(orig_shape)


if __name__ == "__main__":
    key = jax.random.PRNGKey(0)
    # Small NCHW measurements, non-negative (Poisson rate must be >= 0).
    x = jax.random.uniform(key, (2, 4, 16, 16), dtype=jnp.float32) * 5.0

    gain = 1.0
    normalize = True

    y = poisson_noise(x, seed=0, gain=gain, normalize=normalize)
    y = jax.block_until_ready(y)

    assert y.shape == x.shape
    assert y.dtype == jnp.float32
    assert bool(jnp.all(jnp.isfinite(y)))
    assert bool(jnp.all(y >= 0.0))
    # Counts (scaled by gain) must be integer multiples of gain.
    assert bool(jnp.all(jnp.abs(y / gain - jnp.round(y / gain)) < 1e-4))
    # Sanity: sample mean of Poisson(x/gain)*gain should be near mean(x).
    assert abs(float(jnp.mean(y)) - float(jnp.mean(x))) < 0.5

    print("KERNEL_OK")
</pallas_src>

<mosaic_0001>
module attributes {stable_mosaic.version = 11 : i64} {
  func.func @_poisson_kernel(%arg0: i32, %arg1: memref<16x128xf32, #tpu.memory_space<vmem>>, %arg2: memref<16x128xf32, #tpu.memory_space<vmem>>, %arg3: memref<16x128xf32, #tpu.memory_space<vmem>>, %arg4: memref<16x128xf32, #tpu.memory_space<vmem>>) attributes {dimension_semantics = [#tpu.dimension_semantics<parallel>], iteration_bounds = array<i64: 1>, scalar_prefetch = 0 : i64, scratch_operands = 0 : i64, tpu.core_type = #tpu.core_type<tc>, window_params = [{transform_indices = @transform_0, window_bounds = array<i64: 16, 128>}, {transform_indices = @transform_1, window_bounds = array<i64: 16, 128>}, {transform_indices = @transform_2, window_bounds = array<i64: 16, 128>}, {transform_indices = @transform_3, window_bounds = array<i64: 16, 128>}]} {
    %c0 = arith.constant 0 : index
    %c0_0 = arith.constant 0 : index
    %0 = vector.load %arg1[%c0, %c0_0] : memref<16x128xf32, #tpu.memory_space<vmem>>, vector<16x128xf32>
    %cst = arith.constant 1.000000e+00 : f32
    %1 = vector.broadcast %cst : f32 to vector<16x128xf32>
    %2 = arith.mulf %0, %1 : vector<16x128xf32>
    %3 = vector.shape_cast %2 : vector<16x128xf32> to vector<1x16x128xf32>
    %cst_1 = arith.constant dense<0x7F800000> : vector<1xf32>
    %4 = vector.multi_reduction <minimumf>, %3, %cst_1 [1, 2] : vector<1x16x128xf32> to vector<1xf32>
    %5 = vector.shape_cast %4 : vector<1xf32> to vector<1x1x1xf32>
    %6 = vector.extract %5[0, 0, 0] : f32 from vector<1x1x1xf32>
    %7 = vector.shape_cast %2 : vector<16x128xf32> to vector<1x16x128xf32>
    %cst_2 = arith.constant dense<0xFF800000> : vector<1xf32>
    %8 = vector.multi_reduction <maximumf>, %7, %cst_2 [1, 2] : vector<1x16x128xf32> to vector<1xf32>
    %9 = vector.shape_cast %8 : vector<1xf32> to vector<1x1x1xf32>
    %10 = vector.extract %9[0, 0, 0] : f32 from vector<1x1x1xf32>
    %cst_3 = arith.constant 1.200000e+01 : f32
    %11 = arith.cmpf ole, %10, %cst_3 : f32
    %12 = arith.extui %11 : i1 to i32
    %cst_4 = arith.constant 1.000000e+00 : f32
    %c0_i32 = arith.constant 0 : i32
    %13 = arith.cmpi ne, %12, %c0_i32 : i32
    scf.if %13 {
      %c0_12 = arith.constant 0 : index
      %c0_13 = arith.constant 0 : index
      %22 = vector.load %arg2[%c0_12, %c0_13] : memref<16x128xf32, #tpu.memory_space<vmem>>, vector<16x128xf32>
      %cst_14 = arith.constant 0.000000e+00 : f32
      %23 = vector.broadcast %cst_14 : f32 to vector<16x128xf32>
      %24 = arith.subf %23, %2 : vector<16x128xf32>
      %25 = math.exp %24 : vector<16x128xf32>
      %cst_15 = arith.constant 0.000000e+00 : f32
      %26 = vector.broadcast %cst_15 : f32 to vector<16x128xf32>
      %27 = arith.cmpf ogt, %22, %25 : vector<16x128xf32>
      %28 = arith.extui %27 : vector<16x128xi1> to vector<16x128xi32>
      %29 = arith.sitofp %28 : vector<16x128xi32> to vector<16x128xf32>
      %30 = arith.addf %26, %29 : vector<16x128xf32>
      %cst_16 = arith.constant 1.000000e+00 : f32
      %31 = vector.broadcast %cst_16 : f32 to vector<16x128xf32>
      %32 = arith.mulf %2, %31 : vector<16x128xf32>
      %33 = arith.mulf %25, %32 : vector<16x128xf32>
      %34 = arith.addf %25, %33 : vector<16x128xf32>
      %35 = arith.cmpf ogt, %22, %34 : vector<16x128xf32>
      %36 = arith.extui %35 : vector<16x128xi1> to vector<16x128xi32>
      %37 = arith.sitofp %36 : vector<16x128xi32> to vector<16x128xf32>
      %38 = arith.addf %30, %37 : vector<16x128xf32>
      %cst_17 = arith.constant 5.000000e-01 : f32
      %39 = vector.broadcast %cst_17 : f32 to vector<16x128xf32>
      %40 = arith.mulf %2, %39 : vector<16x128xf32>
      %41 = arith.mulf %33, %40 : vector<16x128xf32>
      %42 = arith.addf %34, %41 : vector<16x128xf32>
      %43 = arith.cmpf ogt, %22, %42 : vector<16x128xf32>
      %44 = arith.extui %43 : vector<16x128xi1> to vector<16x128xi32>
      %45 = arith.sitofp %44 : vector<16x128xi32> to vector<16x128xf32>
      %46 = arith.addf %38, %45 : vector<16x128xf32>
      %cst_18 = arith.constant 0.333333343 : f32
      %47 = vector.broadcast %cst_18 : f32 to vector<16x128xf32>
      %48 = arith.mulf %2, %47 : vector<16x128xf32>
      %49 = arith.mulf %41, %48 : vector<16x128xf32>
      %50 = arith.addf %42, %49 : vector<16x128xf32>
      %51 = arith.cmpf ogt, %22, %50 : vector<16x128xf32>
      %52 = arith.extui %51 : vector<16x128xi1> to vector<16x128xi32>
      %53 = arith.sitofp %52 : vector<16x128xi32> to vector<16x128xf32>
      %54 = arith.addf %46, %53 : vector<16x128xf32>
      %cst_19 = arith.constant 2.500000e-01 : f32
      %55 = vector.broadcast %cst_19 : f32 to vector<16x128xf32>
      %56 = arith.mulf %2, %55 : vector<16x128xf32>
      %57 = arith.mulf %49, %56 : vector<16x128xf32>
      %58 = arith.addf %50, %57 : vector<16x128xf32>
      %59 = arith.cmpf ogt, %22, %58 : vector<16x128xf32>
      %60 = arith.extui %59 : vector<16x128xi1> to vector<16x128xi32>
      %61 = arith.sitofp %60 : vector<16x128xi32> to vector<16x128xf32>
      %62 = arith.addf %54, %61 : vector<16x128xf32>
      %cst_20 = arith.constant 2.000000e-01 : f32
      %63 = vector.broadcast %cst_20 : f32 to vector<16x128xf32>
      %64 = arith.mulf %2, %63 : vector<16x128xf32>
      %65 = arith.mulf %57, %64 : vector<16x128xf32>
      %66 = arith.addf %58, %65 : vector<16x128xf32>
      %67 = arith.cmpf ogt, %22, %66 : vector<16x128xf32>
      %68 = arith.extui %67 : vector<16x128xi1> to vector<16x128xi32>
      %69 = arith.sitofp %68 : vector<16x128xi32> to vector<16x128xf32>
      %70 = arith.addf %62, %69 : vector<16x128xf32>
      %cst_21 = arith.constant 0.166666672 : f32
      %71 = vector.broadcast %cst_21 : f32 to vector<16x128xf32>
      %72 = arith.mulf %2, %71 : vector<16x128xf32>
      %73 = arith.mulf %65, %72 : vector<16x128xf32>
      %74 = arith.addf %66, %73 : vector<16x128xf32>
      %75 = arith.cmpf ogt, %22, %74 : vector<16x128xf32>
      %76 = arith.extui %75 : vector<16x128xi1> to vector<16x128xi32>
      %77 = arith.sitofp %76 : vector<16x128xi32> to vector<16x128xf32>
      %78 = arith.addf %70, %77 : vector<16x128xf32>
      %cst_22 = arith.constant 0.142857149 : f32
      %79 = vector.broadcast %cst_22 : f32 to vector<16x128xf32>
      %80 = arith.mulf %2, %79 : vector<16x128xf32>
      %81 = arith.mulf %73, %80 : vector<16x128xf32>
      %82 = arith.addf %74, %81 : vector<16x128xf32>
      %83 = arith.cmpf ogt, %22, %82 : vector<16x128xf32>
      %84 = arith.extui %83 : vector<16x128xi1> to vector<16x128xi32>
      %85 = arith.sitofp %84 : vector<16x128xi32> to vector<16x128xf32>
      %86 = arith.addf %78, %85 : vector<16x128xf32>
      %cst_23 = arith.constant 1.250000e-01 : f32
      %87 = vector.broadcast %cst_23 : f32 to vector<16x128xf32>
      %88 = arith.mulf %2, %87 : vector<16x128xf32>
      %89 = arith.mulf %81, %88 : vector<16x128xf32>
      %90 = arith.addf %82, %89 : vector<16x128xf32>
      %91 = arith.cmpf ogt, %22, %90 : vector<16x128xf32>
      %92 = arith.extui %91 : vector<16x128xi1> to vector<16x128xi32>
      %93 = arith.sitofp %92 : vector<16x128xi32> to vector<16x128xf32>
      %94 = arith.addf %86, %93 : vector<16x128xf32>
      %cst_24 = arith.constant 0.111111112 : f32
      %95 = vector.broadcast %cst_24 : f32 to vector<16x128xf32>
      %96 = arith.mulf %2, %95 : vector<16x128xf32>
      %97 = arith.mulf %89, %96 : vector<16x128xf32>
      %98 = arith.addf %90, %97 : vector<16x128xf32>
      %99 = arith.cmpf ogt, %22, %98 : vector<16x128xf32>
      %100 = arith.extui %99 : vector<16x128xi1> to vector<16x128xi32>
      %101 = arith.sitofp %100 : vector<16x128xi32> to vector<16x128xf32>
      %102 = arith.addf %94, %101 : vector<16x128xf32>
      %cst_25 = arith.constant 1.000000e-01 : f32
      %103 = vector.broadcast %cst_25 : f32 to vector<16x128xf32>
      %104 = arith.mulf %2, %103 : vector<16x128xf32>
      %105 = arith.mulf %97, %104 : vector<16x128xf32>
      %106 = arith.addf %98, %105 : vector<16x128xf32>
      %107 = arith.cmpf ogt, %22, %106 : vector<16x128xf32>
      %108 = arith.extui %107 : vector<16x128xi1> to vector<16x128xi32>
      %109 = arith.sitofp %108 : vector<16x128xi32> to vector<16x128xf32>
      %110 = arith.addf %102, %109 : vector<16x128xf32>
      %cst_26 = arith.constant 0.0909090936 : f32
      %111 = vector.broadcast %cst_26 : f32 to vector<16x128xf32>
      %112 = arith.mulf %2, %111 : vector<16x128xf32>
      %113 = arith.mulf %105, %112 : vector<16x128xf32>
      %114 = arith.addf %106, %113 : vector<16x128xf32>
      %115 = arith.cmpf ogt, %22, %114 : vector<16x128xf32>
      %116 = arith.extui %115 : vector<16x128xi1> to vector<16x128xi32>
      %117 = arith.sitofp %116 : vector<16x128xi32> to vector<16x128xf32>
      %118 = arith.addf %110, %117 : vector<16x128xf32>
      %cst_27 = arith.constant 0.0833333358 : f32
      %119 = vector.broadcast %cst_27 : f32 to vector<16x128xf32>
      %120 = arith.mulf %2, %119 : vector<16x128xf32>
      %121 = arith.mulf %113, %120 : vector<16x128xf32>
      %122 = arith.addf %114, %121 : vector<16x128xf32>
      %123 = arith.cmpf ogt, %22, %122 : vector<16x128xf32>
      %124 = arith.extui %123 : vector<16x128xi1> to vector<16x128xi32>
      %125 = arith.sitofp %124 : vector<16x128xi32> to vector<16x128xf32>
      %126 = arith.addf %118, %125 : vector<16x128xf32>
      %cst_28 = arith.constant 0.0769230798 : f32
      %127 = vector.broadcast %cst_28 : f32 to vector<16x128xf32>
      %128 = arith.mulf %2, %127 : vector<16x128xf32>
      %129 = arith.mulf %121, %128 : vector<16x128xf32>
      %130 = arith.addf %122, %129 : vector<16x128xf32>
      %131 = arith.cmpf ogt, %22, %130 : vector<16x128xf32>
      %132 = arith.extui %131 : vector<16x128xi1> to vector<16x128xi32>
      %133 = arith.sitofp %132 : vector<16x128xi32> to vector<16x128xf32>
      %134 = arith.addf %126, %133 : vector<16x128xf32>
      %cst_29 = arith.constant 0.0714285746 : f32
      %135 = vector.broadcast %cst_29 : f32 to vector<16x128xf32>
      %136 = arith.mulf %2, %135 : vector<16x128xf32>
      %137 = arith.mulf %129, %136 : vector<16x128xf32>
      %138 = arith.addf %130, %137 : vector<16x128xf32>
      %139 = arith.cmpf ogt, %22, %138 : vector<16x128xf32>
      %140 = arith.extui %139 : vector<16x128xi1> to vector<16x128xi32>
      %141 = arith.sitofp %140 : vector<16x128xi32> to vector<16x128xf32>
      %142 = arith.addf %134, %141 : vector<16x128xf32>
      %cst_30 = arith.constant 0.0666666701 : f32
      %143 = vector.broadcast %cst_30 : f32 to vector<16x128xf32>
      %144 = arith.mulf %2, %143 : vector<16x128xf32>
      %145 = arith.mulf %137, %144 : vector<16x128xf32>
      %146 = arith.addf %138, %145 : vector<16x128xf32>
      %147 = arith.cmpf ogt, %22, %146 : vector<16x128xf32>
      %148 = arith.extui %147 : vector<16x128xi1> to vector<16x128xi32>
      %149 = arith.sitofp %148 : vector<16x128xi32> to vector<16x128xf32>
      %150 = arith.addf %142, %149 : vector<16x128xf32>
      %cst_31 = arith.constant 6.250000e-02 : f32
      %151 = vector.broadcast %cst_31 : f32 to vector<16x128xf32>
      %152 = arith.mulf %2, %151 : vector<16x128xf32>
      %153 = arith.mulf %145, %152 : vector<16x128xf32>
      %154 = arith.addf %146, %153 : vector<16x128xf32>
      %155 = arith.cmpf ogt, %22, %154 : vector<16x128xf32>
      %156 = arith.extui %155 : vector<16x128xi1> to vector<16x128xi32>
      %157 = arith.sitofp %156 : vector<16x128xi32> to vector<16x128xf32>
      %158 = arith.addf %150, %157 : vector<16x128xf32>
      %cst_32 = arith.constant 0.0588235296 : f32
      %159 = vector.broadcast %cst_32 : f32 to vector<16x128xf32>
      %160 = arith.mulf %2, %159 : vector<16x128xf32>
      %161 = arith.mulf %153, %160 : vector<16x128xf32>
      %162 = arith.addf %154, %161 : vector<16x128xf32>
      %163 = arith.cmpf ogt, %22, %162 : vector<16x128xf32>
      %164 = arith.extui %163 : vector<16x128xi1> to vector<16x128xi32>
      %165 = arith.sitofp %164 : vector<16x128xi32> to vector<16x128xf32>
      %166 = arith.addf %158, %165 : vector<16x128xf32>
      %cst_33 = arith.constant 0.055555556 : f32
      %167 = vector.broadcast %cst_33 : f32 to vector<16x128xf32>
      %168 = arith.mulf %2, %167 : vector<16x128xf32>
      %169 = arith.mulf %161, %168 : vector<16x128xf32>
      %170 = arith.addf %162, %169 : vector<16x128xf32>
      %171 = arith.cmpf ogt, %22, %170 : vector<16x128xf32>
      %172 = arith.extui %171 : vector<16x128xi1> to vector<16x128xi32>
      %173 = arith.sitofp %172 : vector<16x128xi32> to vector<16x128xf32>
      %174 = arith.addf %166, %173 : vector<16x128xf32>
      %cst_34 = arith.constant 0.0526315793 : f32
      %175 = vector.broadcast %cst_34 : f32 to vector<16x128xf32>
      %176 = arith.mulf %2, %175 : vector<16x128xf32>
      %177 = arith.mulf %169, %176 : vector<16x128xf32>
      %178 = arith.addf %170, %177 : vector<16x128xf32>
      %179 = arith.cmpf ogt, %22, %178 : vector<16x128xf32>
      %180 = arith.extui %179 : vector<16x128xi1> to vector<16x128xi32>
      %181 = arith.sitofp %180 : vector<16x128xi32> to vector<16x128xf32>
      %182 = arith.addf %174, %181 : vector<16x128xf32>
      %cst_35 = arith.constant 5.000000e-02 : f32
      %183 = vector.broadcast %cst_35 : f32 to vector<16x128xf32>
      %184 = arith.mulf %2, %183 : vector<16x128xf32>
      %185 = arith.mulf %177, %184 : vector<16x128xf32>
      %186 = arith.addf %178, %185 : vector<16x128xf32>
      %187 = arith.cmpf ogt, %22, %186 : vector<16x128xf32>
      %188 = arith.extui %187 : vector<16x128xi1> to vector<16x128xi32>
      %189 = arith.sitofp %188 : vector<16x128xi32> to vector<16x128xf32>
      %190 = arith.addf %182, %189 : vector<16x128xf32>
      %cst_36 = arith.constant 0.0476190485 : f32
      %191 = vector.broadcast %cst_36 : f32 to vector<16x128xf32>
      %192 = arith.mulf %2, %191 : vector<16x128xf32>
      %193 = arith.mulf %185, %192 : vector<16x128xf32>
      %194 = arith.addf %186, %193 : vector<16x128xf32>
      %195 = arith.cmpf ogt, %22, %194 : vector<16x128xf32>
      %196 = arith.extui %195 : vector<16x128xi1> to vector<16x128xi32>
      %197 = arith.sitofp %196 : vector<16x128xi32> to vector<16x128xf32>
      %198 = arith.addf %190, %197 : vector<16x128xf32>
      %cst_37 = arith.constant 0.0454545468 : f32
      %199 = vector.broadcast %cst_37 : f32 to vector<16x128xf32>
      %200 = arith.mulf %2, %199 : vector<16x128xf32>
      %201 = arith.mulf %193, %200 : vector<16x128xf32>
      %202 = arith.addf %194, %201 : vector<16x128xf32>
      %203 = arith.cmpf ogt, %22, %202 : vector<16x128xf32>
      %204 = arith.extui %203 : vector<16x128xi1> to vector<16x128xi32>
      %205 = arith.sitofp %204 : vector<16x128xi32> to vector<16x128xf32>
      %206 = arith.addf %198, %205 : vector<16x128xf32>
      %cst_38 = arith.constant 0.0434782617 : f32
      %207 = vector.broadcast %cst_38 : f32 to vector<16x128xf32>
      %208 = arith.mulf %2, %207 : vector<16x128xf32>
      %209 = arith.mulf %201, %208 : vector<16x128xf32>
      %210 = arith.addf %202, %209 : vector<16x128xf32>
      %211 = arith.cmpf ogt, %22, %210 : vector<16x128xf32>
      %212 = arith.extui %211 : vector<16x128xi1> to vector<16x128xi32>
      %213 = arith.sitofp %212 : vector<16x128xi32> to vector<16x128xf32>
      %214 = arith.addf %206, %213 : vector<16x128xf32>
      %cst_39 = arith.constant 0.0416666679 : f32
      %215 = vector.broadcast %cst_39 : f32 to vector<16x128xf32>
      %216 = arith.mulf %2, %215 : vector<16x128xf32>
      %217 = arith.mulf %209, %216 : vector<16x128xf32>
      %218 = arith.addf %210, %217 : vector<16x128xf32>
      %219 = arith.cmpf ogt, %22, %218 : vector<16x128xf32>
      %220 = arith.extui %219 : vector<16x128xi1> to vector<16x128xi32>
      %221 = arith.sitofp %220 : vector<16x128xi32> to vector<16x128xf32>
      %222 = arith.addf %214, %221 : vector<16x128xf32>
      %cst_40 = arith.constant 4.000000e-02 : f32
      %223 = vector.broadcast %cst_40 : f32 to vector<16x128xf32>
      %224 = arith.mulf %2, %223 : vector<16x128xf32>
      %225 = arith.mulf %217, %224 : vector<16x128xf32>
      %226 = arith.addf %218, %225 : vector<16x128xf32>
      %227 = arith.cmpf ogt, %22, %226 : vector<16x128xf32>
      %228 = arith.extui %227 : vector<16x128xi1> to vector<16x128xi32>
      %229 = arith.sitofp %228 : vector<16x128xi32> to vector<16x128xf32>
      %230 = arith.addf %222, %229 : vector<16x128xf32>
      %cst_41 = arith.constant 0.0384615399 : f32
      %231 = vector.broadcast %cst_41 : f32 to vector<16x128xf32>
      %232 = arith.mulf %2, %231 : vector<16x128xf32>
      %233 = arith.mulf %225, %232 : vector<16x128xf32>
      %234 = arith.addf %226, %233 : vector<16x128xf32>
      %235 = arith.cmpf ogt, %22, %234 : vector<16x128xf32>
      %236 = arith.extui %235 : vector<16x128xi1> to vector<16x128xi32>
      %237 = arith.sitofp %236 : vector<16x128xi32> to vector<16x128xf32>
      %238 = arith.addf %230, %237 : vector<16x128xf32>
      %cst_42 = arith.constant 0.0370370373 : f32
      %239 = vector.broadcast %cst_42 : f32 to vector<16x128xf32>
      %240 = arith.mulf %2, %239 : vector<16x128xf32>
      %241 = arith.mulf %233, %240 : vector<16x128xf32>
      %242 = arith.addf %234, %241 : vector<16x128xf32>
      %243 = arith.cmpf ogt, %22, %242 : vector<16x128xf32>
      %244 = arith.extui %243 : vector<16x128xi1> to vector<16x128xi32>
      %245 = arith.sitofp %244 : vector<16x128xi32> to vector<16x128xf32>
      %246 = arith.addf %238, %245 : vector<16x128xf32>
      %cst_43 = arith.constant 0.0357142873 : f32
      %247 = vector.broadcast %cst_43 : f32 to vector<16x128xf32>
      %248 = arith.mulf %2, %247 : vector<16x128xf32>
      %249 = arith.mulf %241, %248 : vector<16x128xf32>
      %250 = arith.addf %242, %249 : vector<16x128xf32>
      %251 = arith.cmpf ogt, %22, %250 : vector<16x128xf32>
      %252 = arith.extui %251 : vector<16x128xi1> to vector<16x128xi32>
      %253 = arith.sitofp %252 : vector<16x128xi32> to vector<16x128xf32>
      %254 = arith.addf %246, %253 : vector<16x128xf32>
      %cst_44 = arith.constant 0.0344827585 : f32
      %255 = vector.broadcast %cst_44 : f32 to vector<16x128xf32>
      %256 = arith.mulf %2, %255 : vector<16x128xf32>
      %257 = arith.mulf %249, %256 : vector<16x128xf32>
      %258 = arith.addf %250, %257 : vector<16x128xf32>
      %259 = arith.cmpf ogt, %22, %258 : vector<16x128xf32>
      %260 = arith.extui %259 : vector<16x128xi1> to vector<16x128xi32>
      %261 = arith.sitofp %260 : vector<16x128xi32> to vector<16x128xf32>
      %262 = arith.addf %254, %261 : vector<16x128xf32>
      %cst_45 = arith.constant 0.0333333351 : f32
      %263 = vector.broadcast %cst_45 : f32 to vector<16x128xf32>
      %264 = arith.mulf %2, %263 : vector<16x128xf32>
      %265 = arith.mulf %257, %264 : vector<16x128xf32>
      %266 = arith.addf %258, %265 : vector<16x128xf32>
      %267 = arith.cmpf ogt, %22, %266 : vector<16x128xf32>
      %268 = arith.extui %267 : vector<16x128xi1> to vector<16x128xi32>
      %269 = arith.sitofp %268 : vector<16x128xi32> to vector<16x128xf32>
      %270 = arith.addf %262, %269 : vector<16x128xf32>
      %cst_46 = arith.constant 0.0322580636 : f32
      %271 = vector.broadcast %cst_46 : f32 to vector<16x128xf32>
      %272 = arith.mulf %2, %271 : vector<16x128xf32>
      %273 = arith.mulf %265, %272 : vector<16x128xf32>
      %274 = arith.addf %266, %273 : vector<16x128xf32>
      %275 = arith.cmpf ogt, %22, %274 : vector<16x128xf32>
      %276 = arith.extui %275 : vector<16x128xi1> to vector<16x128xi32>
      %277 = arith.sitofp %276 : vector<16x128xi32> to vector<16x128xf32>
      %278 = arith.addf %270, %277 : vector<16x128xf32>
      %cst_47 = arith.constant 3.125000e-02 : f32
      %279 = vector.broadcast %cst_47 : f32 to vector<16x128xf32>
      %280 = arith.mulf %2, %279 : vector<16x128xf32>
      %281 = arith.mulf %273, %280 : vector<16x128xf32>
      %282 = arith.addf %274, %281 : vector<16x128xf32>
      %283 = arith.cmpf ogt, %22, %282 : vector<16x128xf32>
      %284 = arith.extui %283 : vector<16x128xi1> to vector<16x128xi32>
      %285 = arith.sitofp %284 : vector<16x128xi32> to vector<16x128xf32>
      %286 = arith.addf %278, %285 : vector<16x128xf32>
      %cst_48 = arith.constant 0.0303030312 : f32
      %287 = vector.broadcast %cst_48 : f32 to vector<16x128xf32>
      %288 = arith.mulf %2, %287 : vector<16x128xf32>
      %289 = arith.mulf %281, %288 : vector<16x128xf32>
      %290 = arith.addf %282, %289 : vector<16x128xf32>
      %291 = arith.cmpf ogt, %22, %290 : vector<16x128xf32>
      %292 = arith.extui %291 : vector<16x128xi1> to vector<16x128xi32>
      %293 = arith.sitofp %292 : vector<16x128xi32> to vector<16x128xf32>
      %294 = arith.addf %286, %293 : vector<16x128xf32>
      %cst_49 = arith.constant 0.0294117648 : f32
      %295 = vector.broadcast %cst_49 : f32 to vector<16x128xf32>
      %296 = arith.mulf %2, %295 : vector<16x128xf32>
      %297 = arith.mulf %289, %296 : vector<16x128xf32>
      %298 = arith.addf %290, %297 : vector<16x128xf32>
      %299 = arith.cmpf ogt, %22, %298 : vector<16x128xf32>
      %300 = arith.extui %299 : vector<16x128xi1> to vector<16x128xi32>
      %301 = arith.sitofp %300 : vector<16x128xi32> to vector<16x128xf32>
      %302 = arith.addf %294, %301 : vector<16x128xf32>
      %cst_50 = arith.constant 0.0285714287 : f32
      %303 = vector.broadcast %cst_50 : f32 to vector<16x128xf32>
      %304 = arith.mulf %2, %303 : vector<16x128xf32>
      %305 = arith.mulf %297, %304 : vector<16x128xf32>
      %306 = arith.addf %298, %305 : vector<16x128xf32>
      %307 = arith.cmpf ogt, %22, %306 : vector<16x128xf32>
      %308 = arith.extui %307 : vector<16x128xi1> to vector<16x128xi32>
      %309 = arith.sitofp %308 : vector<16x128xi32> to vector<16x128xf32>
      %310 = arith.addf %302, %309 : vector<16x128xf32>
      %311 = vector.broadcast %cst_4 : f32 to vector<16x128xf32>
      %312 = arith.mulf %310, %311 : vector<16x128xf32>
      %c0_51 = arith.constant 0 : index
      %c0_52 = arith.constant 0 : index
      %313 = vector.load %arg4[%c0_51, %c0_52] : memref<16x128xf32, #tpu.memory_space<vmem>>, vector<16x128xf32>
      tpu.vector_store %arg4[%c0_51, %c0_52], %312 {strides = array<i32>} : memref<16x128xf32, #tpu.memory_space<vmem>>, vector<16x128xf32>,
    } else {
    }
    %cst_5 = arith.constant 1.200000e+01 : f32
    %14 = arith.cmpf ogt, %6, %cst_5 : f32
    %15 = arith.extui %14 : i1 to i32
    %cst_6 = arith.constant 1.000000e+00 : f32
    %c0_i32_7 = arith.constant 0 : i32
    %16 = arith.cmpi ne, %15, %c0_i32_7 : i32
    scf.if %16 {
      %c0_12 = arith.constant 0 : index
      %c0_13 = arith.constant 0 : index
      %22 = vector.load %arg3[%c0_12, %c0_13] : memref<16x128xf32, #tpu.memory_space<vmem>>, vector<16x128xf32>
      %23 = math.sqrt %2 : vector<16x128xf32>
      %24 = arith.mulf %23, %22 : vector<16x128xf32>
      %25 = arith.addf %2, %24 : vector<16x128xf32>
      %cst_14 = arith.constant 5.000000e-01 : f32
      %26 = vector.broadcast %cst_14 : f32 to vector<16x128xf32>
      %27 = arith.addf %25, %26 : vector<16x128xf32>
      %28 = math.floor %27 : vector<16x128xf32>
      %cst_15 = arith.constant 0.000000e+00 : f32
      %29 = vector.broadcast %cst_15 : f32 to vector<16x128xf32>
      %30 = arith.maximumf %28, %29 : vector<16x128xf32>
      %31 = vector.broadcast %cst_6 : f32 to vector<16x128xf32>
      %32 = arith.mulf %30, %31 : vector<16x128xf32>
      %c0_16 = arith.constant 0 : index
      %c0_17 = arith.constant 0 : index
      %33 = vector.load %arg4[%c0_16, %c0_17] : memref<16x128xf32, #tpu.memory_space<vmem>>, vector<16x128xf32>
      tpu.vector_store %arg4[%c0_16, %c0_17], %32 {strides = array<i32>} : memref<16x128xf32, #tpu.memory_space<vmem>>, vector<16x128xf32>,
    } else {
    }
    %cst_8 = arith.constant 1.200000e+01 : f32
    %17 = arith.cmpf ole, %6, %cst_8 : f32
    %cst_9 = arith.constant 1.200000e+01 : f32
    %18 = arith.cmpf ogt, %10, %cst_9 : f32
    %19 = arith.andi %17, %18 : i1
    %20 = arith.extui %19 : i1 to i32
    %cst_10 = arith.constant 1.000000e+00 : f32
    %c0_i32_11 = arith.constant 0 : i32
    %21 = arith.cmpi ne, %20, %c0_i32_11 : i32
    scf.if %21 {
      %cst_12 = arith.constant 1.200000e+01 : f32
      %22 = vector.broadcast %cst_12 : f32 to vector<16x128xf32>
      %23 = arith.cmpf ogt, %2, %22 : vector<16x128xf32>
      %c0_13 = arith.constant 0 : index
      %c0_14 = arith.constant 0 : index
      %24 = vector.load %arg3[%c0_13, %c0_14] : memref<16x128xf32, #tpu.memory_space<vmem>>, vector<16x128xf32>
      %25 = math.sqrt %2 : vector<16x128xf32>
      %26 = arith.mulf %25, %24 : vector<16x128xf32>
      %27 = arith.addf %2, %26 : vector<16x128xf32>
      %cst_15 = arith.constant 5.000000e-01 : f32
      %28 = vector.broadcast %cst_15 : f32 to vector<16x128xf32>
      %29 = arith.addf %27, %28 : vector<16x128xf32>
      %30 = math.floor %29 : vector<16x128xf32>
      %cst_16 = arith.constant 0.000000e+00 : f32
      %31 = vector.broadcast %cst_16 : f32 to vector<16x128xf32>
      %32 = arith.maximumf %30, %31 : vector<16x128xf32>
      %c0_17 = arith.constant 0 : index
      %c0_18 = arith.constant 0 : index
      %33 = vector.load %arg2[%c0_17, %c0_18] : memref<16x128xf32, #tpu.memory_space<vmem>>, vector<16x128xf32>
      %cst_19 = arith.constant 0.000000e+00 : f32
      %34 = vector.broadcast %cst_19 : f32 to vector<16x128xf32>
      %35 = arith.subf %34, %2 : vector<16x128xf32>
      %36 = math.exp %35 : vector<16x128xf32>
      %cst_20 = arith.constant 0.000000e+00 : f32
      %37 = vector.broadcast %cst_20 : f32 to vector<16x128xf32>
      %38 = arith.cmpf ogt, %33, %36 : vector<16x128xf32>
      %39 = arith.extui %38 : vector<16x128xi1> to vector<16x128xi32>
      %40 = arith.sitofp %39 : vector<16x128xi32> to vector<16x128xf32>
      %41 = arith.addf %37, %40 : vector<16x128xf32>
      %cst_21 = arith.constant 1.000000e+00 : f32
      %42 = vector.broadcast %cst_21 : f32 to vector<16x128xf32>
      %43 = arith.mulf %2, %42 : vector<16x128xf32>
      %44 = arith.mulf %36, %43 : vector<16x128xf32>
      %45 = arith.addf %36, %44 : vector<16x128xf32>
      %46 = arith.cmpf ogt, %33, %45 : vector<16x128xf32>
      %47 = arith.extui %46 : vector<16x128xi1> to vector<16x128xi32>
      %48 = arith.sitofp %47 : vector<16x128xi32> to vector<16x128xf32>
      %49 = arith.addf %41, %48 : vector<16x128xf32>
      %cst_22 = arith.constant 5.000000e-01 : f32
      %50 = vector.broadcast %cst_22 : f32 to vector<16x128xf32>
      %51 = arith.mulf %2, %50 : vector<16x128xf32>
      %52 = arith.mulf %44, %51 : vector<16x128xf32>
      %53 = arith.addf %45, %52 : vector<16x128xf32>
      %54 = arith.cmpf ogt, %33, %53 : vector<16x128xf32>
      %55 = arith.extui %54 : vector<16x128xi1> to vector<16x128xi32>
      %56 = arith.sitofp %55 : vector<16x128xi32> to vector<16x128xf32>
      %57 = arith.addf %49, %56 : vector<16x128xf32>
      %cst_23 = arith.constant 0.333333343 : f32
      %58 = vector.broadcast %cst_23 : f32 to vector<16x128xf32>
      %59 = arith.mulf %2, %58 : vector<16x128xf32>
      %60 = arith.mulf %52, %59 : vector<16x128xf32>
      %61 = arith.addf %53, %60 : vector<16x128xf32>
      %62 = arith.cmpf ogt, %33, %61 : vector<16x128xf32>
      %63 = arith.extui %62 : vector<16x128xi1> to vector<16x128xi32>
      %64 = arith.sitofp %63 : vector<16x128xi32> to vector<16x128xf32>
      %65 = arith.addf %57, %64 : vector<16x128xf32>
      %cst_24 = arith.constant 2.500000e-01 : f32
      %66 = vector.broadcast %cst_24 : f32 to vector<16x128xf32>
      %67 = arith.mulf %2, %66 : vector<16x128xf32>
      %68 = arith.mulf %60, %67 : vector<16x128xf32>
      %69 = arith.addf %61, %68 : vector<16x128xf32>
      %70 = arith.cmpf ogt, %33, %69 : vector<16x128xf32>
      %71 = arith.extui %70 : vector<16x128xi1> to vector<16x128xi32>
      %72 = arith.sitofp %71 : vector<16x128xi32> to vector<16x128xf32>
      %73 = arith.addf %65, %72 : vector<16x128xf32>
      %cst_25 = arith.constant 2.000000e-01 : f32
      %74 = vector.broadcast %cst_25 : f32 to vector<16x128xf32>
      %75 = arith.mulf %2, %74 : vector<16x128xf32>
      %76 = arith.mulf %68, %75 : vector<16x128xf32>
      %77 = arith.addf %69, %76 : vector<16x128xf32>
      %78 = arith.cmpf ogt, %33, %77 : vector<16x128xf32>
      %79 = arith.extui %78 : vector<16x128xi1> to vector<16x128xi32>
      %80 = arith.sitofp %79 : vector<16x128xi32> to vector<16x128xf32>
      %81 = arith.addf %73, %80 : vector<16x128xf32>
      %cst_26 = arith.constant 0.166666672 : f32
      %82 = vector.broadcast %cst_26 : f32 to vector<16x128xf32>
      %83 = arith.mulf %2, %82 : vector<16x128xf32>
      %84 = arith.mulf %76, %83 : vector<16x128xf32>
      %85 = arith.addf %77, %84 : vector<16x128xf32>
      %86 = arith.cmpf ogt, %33, %85 : vector<16x128xf32>
      %87 = arith.extui %86 : vector<16x128xi1> to vector<16x128xi32>
      %88 = arith.sitofp %87 : vector<16x128xi32> to vector<16x128xf32>
      %89 = arith.addf %81, %88 : vector<16x128xf32>
      %cst_27 = arith.constant 0.142857149 : f32
      %90 = vector.broadcast %cst_27 : f32 to vector<16x128xf32>
      %91 = arith.mulf %2, %90 : vector<16x128xf32>
      %92 = arith.mulf %84, %91 : vector<16x128xf32>
      %93 = arith.addf %85, %92 : vector<16x128xf32>
      %94 = arith.cmpf ogt, %33, %93 : vector<16x128xf32>
      %95 = arith.extui %94 : vector<16x128xi1> to vector<16x128xi32>
      %96 = arith.sitofp %95 : vector<16x128xi32> to vector<16x128xf32>
      %97 = arith.addf %89, %96 : vector<16x128xf32>
      %cst_28 = arith.constant 1.250000e-01 : f32
      %98 = vector.broadcast %cst_28 : f32 to vector<16x128xf32>
      %99 = arith.mulf %2, %98 : vector<16x128xf32>
      %100 = arith.mulf %92, %99 : vector<16x128xf32>
      %101 = arith.addf %93, %100 : vector<16x128xf32>
      %102 = arith.cmpf ogt, %33, %101 : vector<16x128xf32>
      %103 = arith.extui %102 : vector<16x128xi1> to vector<16x128xi32>
      %104 = arith.sitofp %103 : vector<16x128xi32> to vector<16x128xf32>
      %105 = arith.addf %97, %104 : vector<16x128xf32>
      %cst_29 = arith.constant 0.111111112 : f32
      %106 = vector.broadcast %cst_29 : f32 to vector<16x128xf32>
      %107 = arith.mulf %2, %106 : vector<16x128xf32>
      %108 = arith.mulf %100, %107 : vector<16x128xf32>
      %109 = arith.addf %101, %108 : vector<16x128xf32>
      %110 = arith.cmpf ogt, %33, %109 : vector<16x128xf32>
      %111 = arith.extui %110 : vector<16x128xi1> to vector<16x128xi32>
      %112 = arith.sitofp %111 : vector<16x128xi32> to vector<16x128xf32>
      %113 = arith.addf %105, %112 : vector<16x128xf32>
      %cst_30 = arith.constant 1.000000e-01 : f32
      %114 = vector.broadcast %cst_30 : f32 to vector<16x128xf32>
      %115 = arith.mulf %2, %114 : vector<16x128xf32>
      %116 = arith.mulf %108, %115 : vector<16x128xf32>
      %117 = arith.addf %109, %116 : vector<16x128xf32>
      %118 = arith.cmpf ogt, %33, %117 : vector<16x128xf32>
      %119 = arith.extui %118 : vector<16x128xi1> to vector<16x128xi32>
      %120 = arith.sitofp %119 : vector<16x128xi32> to vector<16x128xf32>
      %121 = arith.addf %113, %120 : vector<16x128xf32>
      %cst_31 = arith.constant 0.0909090936 : f32
      %122 = vector.broadcast %cst_31 : f32 to vector<16x128xf32>
      %123 = arith.mulf %2, %122 : vector<16x128xf32>
      %124 = arith.mulf %116, %123 : vector<16x128xf32>
      %125 = arith.addf %117, %124 : vector<16x128xf32>
      %126 = arith.cmpf ogt, %33, %125 : vector<16x128xf32>
      %127 = arith.extui %126 : vector<16x128xi1> to vector<16x128xi32>
      %128 = arith.sitofp %127 : vector<16x128xi32> to vector<16x128xf32>
      %129 = arith.addf %121, %128 : vector<16x128xf32>
      %cst_32 = arith.constant 0.0833333358 : f32
      %130 = vector.broadcast %cst_32 : f32 to vector<16x128xf32>
      %131 = arith.mulf %2, %130 : vector<16x128xf32>
      %132 = arith.mulf %124, %131 : vector<16x128xf32>
      %133 = arith.addf %125, %132 : vector<16x128xf32>
      %134 = arith.cmpf ogt, %33, %133 : vector<16x128xf32>
      %135 = arith.extui %134 : vector<16x128xi1> to vector<16x128xi32>
      %136 = arith.sitofp %135 : vector<16x128xi32> to vector<16x128xf32>
      %137 = arith.addf %129, %136 : vector<16x128xf32>
      %cst_33 = arith.constant 0.0769230798 : f32
      %138 = vector.broadcast %cst_33 : f32 to vector<16x128xf32>
      %139 = arith.mulf %2, %138 : vector<16x128xf32>
      %140 = arith.mulf %132, %139 : vector<16x128xf32>
      %141 = arith.addf %133, %140 : vector<16x128xf32>
      %142 = arith.cmpf ogt, %33, %141 : vector<16x128xf32>
      %143 = arith.extui %142 : vector<16x128xi1> to vector<16x128xi32>
      %144 = arith.sitofp %143 : vector<16x128xi32> to vector<16x128xf32>
      %145 = arith.addf %137, %144 : vector<16x128xf32>
      %cst_34 = arith.constant 0.0714285746 : f32
      %146 = vector.broadcast %cst_34 : f32 to vector<16x128xf32>
      %147 = arith.mulf %2, %146 : vector<16x128xf32>
      %148 = arith.mulf %140, %147 : vector<16x128xf32>
      %149 = arith.addf %141, %148 : vector<16x128xf32>
      %150 = arith.cmpf ogt, %33, %149 : vector<16x128xf32>
      %151 = arith.extui %150 : vector<16x128xi1> to vector<16x128xi32>
      %152 = arith.sitofp %151 : vector<16x128xi32> to vector<16x128xf32>
      %153 = arith.addf %145, %152 : vector<16x128xf32>
      %cst_35 = arith.constant 0.0666666701 : f32
      %154 = vector.broadcast %cst_35 : f32 to vector<16x128xf32>
      %155 = arith.mulf %2, %154 : vector<16x128xf32>
      %156 = arith.mulf %148, %155 : vector<16x128xf32>
      %157 = arith.addf %149, %156 : vector<16x128xf32>
      %158 = arith.cmpf ogt, %33, %157 : vector<16x128xf32>
      %159 = arith.extui %158 : vector<16x128xi1> to vector<16x128xi32>
      %160 = arith.sitofp %159 : vector<16x128xi32> to vector<16x128xf32>
      %161 = arith.addf %153, %160 : vector<16x128xf32>
      %cst_36 = arith.constant 6.250000e-02 : f32
      %162 = vector.broadcast %cst_36 : f32 to vector<16x128xf32>
      %163 = arith.mulf %2, %162 : vector<16x128xf32>
      %164 = arith.mulf %156, %163 : vector<16x128xf32>
      %165 = arith.addf %157, %164 : vector<16x128xf32>
      %166 = arith.cmpf ogt, %33, %165 : vector<16x128xf32>
      %167 = arith.extui %166 : vector<16x128xi1> to vector<16x128xi32>
      %168 = arith.sitofp %167 : vector<16x128xi32> to vector<16x128xf32>
      %169 = arith.addf %161, %168 : vector<16x128xf32>
      %cst_37 = arith.constant 0.0588235296 : f32
      %170 = vector.broadcast %cst_37 : f32 to vector<16x128xf32>
      %171 = arith.mulf %2, %170 : vector<16x128xf32>
      %172 = arith.mulf %164, %171 : vector<16x128xf32>
      %173 = arith.addf %165, %172 : vector<16x128xf32>
      %174 = arith.cmpf ogt, %33, %173 : vector<16x128xf32>
      %175 = arith.extui %174 : vector<16x128xi1> to vector<16x128xi32>
      %176 = arith.sitofp %175 : vector<16x128xi32> to vector<16x128xf32>
      %177 = arith.addf %169, %176 : vector<16x128xf32>
      %cst_38 = arith.constant 0.055555556 : f32
      %178 = vector.broadcast %cst_38 : f32 to vector<16x128xf32>
      %179 = arith.mulf %2, %178 : vector<16x128xf32>
      %180 = arith.mulf %172, %179 : vector<16x128xf32>
      %181 = arith.addf %173, %180 : vector<16x128xf32>
      %182 = arith.cmpf ogt, %33, %181 : vector<16x128xf32>
      %183 = arith.extui %182 : vector<16x128xi1> to vector<16x128xi32>
      %184 = arith.sitofp %183 : vector<16x128xi32> to vector<16x128xf32>
      %185 = arith.addf %177, %184 : vector<16x128xf32>
      %cst_39 = arith.constant 0.0526315793 : f32
      %186 = vector.broadcast %cst_39 : f32 to vector<16x128xf32>
      %187 = arith.mulf %2, %186 : vector<16x128xf32>
      %188 = arith.mulf %180, %187 : vector<16x128xf32>
      %189 = arith.addf %181, %188 : vector<16x128xf32>
      %190 = arith.cmpf ogt, %33, %189 : vector<16x128xf32>
      %191 = arith.extui %190 : vector<16x128xi1> to vector<16x128xi32>
      %192 = arith.sitofp %191 : vector<16x128xi32> to vector<16x128xf32>
      %193 = arith.addf %185, %192 : vector<16x128xf32>
      %cst_40 = arith.constant 5.000000e-02 : f32
      %194 = vector.broadcast %cst_40 : f32 to vector<16x128xf32>
      %195 = arith.mulf %2, %194 : vector<16x128xf32>
      %196 = arith.mulf %188, %195 : vector<16x128xf32>
      %197 = arith.addf %189, %196 : vector<16x128xf32>
      %198 = arith.cmpf ogt, %33, %197 : vector<16x128xf32>
      %199 = arith.extui %198 : vector<16x128xi1> to vector<16x128xi32>
      %200 = arith.sitofp %199 : vector<16x128xi32> to vector<16x128xf32>
      %201 = arith.addf %193, %200 : vector<16x128xf32>
      %cst_41 = arith.constant 0.0476190485 : f32
      %202 = vector.broadcast %cst_41 : f32 to vector<16x128xf32>
      %203 = arith.mulf %2, %202 : vector<16x128xf32>
      %204 = arith.mulf %196, %203 : vector<16x128xf32>
      %205 = arith.addf %197, %204 : vector<16x128xf32>
      %206 = arith.cmpf ogt, %33, %205 : vector<16x128xf32>
      %207 = arith.extui %206 : vector<16x128xi1> to vector<16x128xi32>
      %208 = arith.sitofp %207 : vector<16x128xi32> to vector<16x128xf32>
      %209 = arith.addf %201, %208 : vector<16x128xf32>
      %cst_42 = arith.constant 0.0454545468 : f32
      %210 = vector.broadcast %cst_42 : f32 to vector<16x128xf32>
      %211 = arith.mulf %2, %210 : vector<16x128xf32>
      %212 = arith.mulf %204, %211 : vector<16x128xf32>
      %213 = arith.addf %205, %212 : vector<16x128xf32>
      %214 = arith.cmpf ogt, %33, %213 : vector<16x128xf32>
      %215 = arith.extui %214 : vector<16x128xi1> to vector<16x128xi32>
      %216 = arith.sitofp %215 : vector<16x128xi32> to vector<16x128xf32>
      %217 = arith.addf %209, %216 : vector<16x128xf32>
      %cst_43 = arith.constant 0.0434782617 : f32
      %218 = vector.broadcast %cst_43 : f32 to vector<16x128xf32>
      %219 = arith.mulf %2, %218 : vector<16x128xf32>
      %220 = arith.mulf %212, %219 : vector<16x128xf32>
      %221 = arith.addf %213, %220 : vector<16x128xf32>
      %222 = arith.cmpf ogt, %33, %221 : vector<16x128xf32>
      %223 = arith.extui %222 : vector<16x128xi1> to vector<16x128xi32>
      %224 = arith.sitofp %223 : vector<16x128xi32> to vector<16x128xf32>
      %225 = arith.addf %217, %224 : vector<16x128xf32>
      %cst_44 = arith.constant 0.0416666679 : f32
      %226 = vector.broadcast %cst_44 : f32 to vector<16x128xf32>
      %227 = arith.mulf %2, %226 : vector<16x128xf32>
      %228 = arith.mulf %220, %227 : vector<16x128xf32>
      %229 = arith.addf %221, %228 : vector<16x128xf32>
      %230 = arith.cmpf ogt, %33, %229 : vector<16x128xf32>
      %231 = arith.extui %230 : vector<16x128xi1> to vector<16x128xi32>
      %232 = arith.sitofp %231 : vector<16x128xi32> to vector<16x128xf32>
      %233 = arith.addf %225, %232 : vector<16x128xf32>
      %cst_45 = arith.constant 4.000000e-02 : f32
      %234 = vector.broadcast %cst_45 : f32 to vector<16x128xf32>
      %235 = arith.mulf %2, %234 : vector<16x128xf32>
      %236 = arith.mulf %228, %235 : vector<16x128xf32>
      %237 = arith.addf %229, %236 : vector<16x128xf32>
      %238 = arith.cmpf ogt, %33, %237 : vector<16x128xf32>
      %239 = arith.extui %238 : vector<16x128xi1> to vector<16x128xi32>
      %240 = arith.sitofp %239 : vector<16x128xi32> to vector<16x128xf32>
      %241 = arith.addf %233, %240 : vector<16x128xf32>
      %cst_46 = arith.constant 0.0384615399 : f32
      %242 = vector.broadcast %cst_46 : f32 to vector<16x128xf32>
      %243 = arith.mulf %2, %242 : vector<16x128xf32>
      %244 = arith.mulf %236, %243 : vector<16x128xf32>
      %245 = arith.addf %237, %244 : vector<16x128xf32>
      %246 = arith.cmpf ogt, %33, %245 : vector<16x128xf32>
      %247 = arith.extui %246 : vector<16x128xi1> to vector<16x128xi32>
      %248 = arith.sitofp %247 : vector<16x128xi32> to vector<16x128xf32>
      %249 = arith.addf %241, %248 : vector<16x128xf32>
      %cst_47 = arith.constant 0.0370370373 : f32
      %250 = vector.broadcast %cst_47 : f32 to vector<16x128xf32>
      %251 = arith.mulf %2, %250 : vector<16x128xf32>
      %252 = arith.mulf %244, %251 : vector<16x128xf32>
      %253 = arith.addf %245, %252 : vector<16x128xf32>
      %254 = arith.cmpf ogt, %33, %253 : vector<16x128xf32>
      %255 = arith.extui %254 : vector<16x128xi1> to vector<16x128xi32>
      %256 = arith.sitofp %255 : vector<16x128xi32> to vector<16x128xf32>
      %257 = arith.addf %249, %256 : vector<16x128xf32>
      %cst_48 = arith.constant 0.0357142873 : f32
      %258 = vector.broadcast %cst_48 : f32 to vector<16x128xf32>
      %259 = arith.mulf %2, %258 : vector<16x128xf32>
      %260 = arith.mulf %252, %259 : vector<16x128xf32>
      %261 = arith.addf %253, %260 : vector<16x128xf32>
      %262 = arith.cmpf ogt, %33, %261 : vector<16x128xf32>
      %263 = arith.extui %262 : vector<16x128xi1> to vector<16x128xi32>
      %264 = arith.sitofp %263 : vector<16x128xi32> to vector<16x128xf32>
      %265 = arith.addf %257, %264 : vector<16x128xf32>
      %cst_49 = arith.constant 0.0344827585 : f32
      %266 = vector.broadcast %cst_49 : f32 to vector<16x128xf32>
      %267 = arith.mulf %2, %266 : vector<16x128xf32>
      %268 = arith.mulf %260, %267 : vector<16x128xf32>
      %269 = arith.addf %261, %268 : vector<16x128xf32>
      %270 = arith.cmpf ogt, %33, %269 : vector<16x128xf32>
      %271 = arith.extui %270 : vector<16x128xi1> to vector<16x128xi32>
      %272 = arith.sitofp %271 : vector<16x128xi32> to vector<16x128xf32>
      %273 = arith.addf %265, %272 : vector<16x128xf32>
      %cst_50 = arith.constant 0.0333333351 : f32
      %274 = vector.broadcast %cst_50 : f32 to vector<16x128xf32>
      %275 = arith.mulf %2, %274 : vector<16x128xf32>
      %276 = arith.mulf %268, %275 : vector<16x128xf32>
      %277 = arith.addf %269, %276 : vector<16x128xf32>
      %278 = arith.cmpf ogt, %33, %277 : vector<16x128xf32>
      %279 = arith.extui %278 : vector<16x128xi1> to vector<16x128xi32>
      %280 = arith.sitofp %279 : vector<16x128xi32> to vector<16x128xf32>
      %281 = arith.addf %273, %280 : vector<16x128xf32>
      %cst_51 = arith.constant 0.0322580636 : f32
      %282 = vector.broadcast %cst_51 : f32 to vector<16x128xf32>
      %283 = arith.mulf %2, %282 : vector<16x128xf32>
      %284 = arith.mulf %276, %283 : vector<16x128xf32>
      %285 = arith.addf %277, %284 : vector<16x128xf32>
      %286 = arith.cmpf ogt, %33, %285 : vector<16x128xf32>
      %287 = arith.extui %286 : vector<16x128xi1> to vector<16x128xi32>
      %288 = arith.sitofp %287 : vector<16x128xi32> to vector<16x128xf32>
      %289 = arith.addf %281, %288 : vector<16x128xf32>
      %cst_52 = arith.constant 3.125000e-02 : f32
      %290 = vector.broadcast %cst_52 : f32 to vector<16x128xf32>
      %291 = arith.mulf %2, %290 : vector<16x128xf32>
      %292 = arith.mulf %284, %291 : vector<16x128xf32>
      %293 = arith.addf %285, %292 : vector<16x128xf32>
      %294 = arith.cmpf ogt, %33, %293 : vector<16x128xf32>
      %295 = arith.extui %294 : vector<16x128xi1> to vector<16x128xi32>
      %296 = arith.sitofp %295 : vector<16x128xi32> to vector<16x128xf32>
      %297 = arith.addf %289, %296 : vector<16x128xf32>
      %cst_53 = arith.constant 0.0303030312 : f32
      %298 = vector.broadcast %cst_53 : f32 to vector<16x128xf32>
      %299 = arith.mulf %2, %298 : vector<16x128xf32>
      %300 = arith.mulf %292, %299 : vector<16x128xf32>
      %301 = arith.addf %293, %300 : vector<16x128xf32>
      %302 = arith.cmpf ogt, %33, %301 : vector<16x128xf32>
      %303 = arith.extui %302 : vector<16x128xi1> to vector<16x128xi32>
      %304 = arith.sitofp %303 : vector<16x128xi32> to vector<16x128xf32>
      %305 = arith.addf %297, %304 : vector<16x128xf32>
      %cst_54 = arith.constant 0.0294117648 : f32
      %306 = vector.broadcast %cst_54 : f32 to vector<16x128xf32>
      %307 = arith.mulf %2, %306 : vector<16x128xf32>
      %308 = arith.mulf %300, %307 : vector<16x128xf32>
      %309 = arith.addf %301, %308 : vector<16x128xf32>
      %310 = arith.cmpf ogt, %33, %309 : vector<16x128xf32>
      %311 = arith.extui %310 : vector<16x128xi1> to vector<16x128xi32>
      %312 = arith.sitofp %311 : vector<16x128xi32> to vector<16x128xf32>
      %313 = arith.addf %305, %312 : vector<16x128xf32>
      %cst_55 = arith.constant 0.0285714287 : f32
      %314 = vector.broadcast %cst_55 : f32 to vector<16x128xf32>
      %315 = arith.mulf %2, %314 : vector<16x128xf32>
      %316 = arith.mulf %308, %315 : vector<16x128xf32>
      %317 = arith.addf %309, %316 : vector<16x128xf32>
      %318 = arith.cmpf ogt, %33, %317 : vector<16x128xf32>
      %319 = arith.extui %318 : vector<16x128xi1> to vector<16x128xi32>
      %320 = arith.sitofp %319 : vector<16x128xi32> to vector<16x128xf32>
      %321 = arith.addf %313, %320 : vector<16x128xf32>
      %322 = arith.select %23, %32, %321 : vector<16x128xi1>, vector<16x128xf32>
      %323 = vector.broadcast %cst_10 : f32 to vector<16x128xf32>
      %324 = arith.mulf %322, %323 : vector<16x128xf32>
      %c0_56 = arith.constant 0 : index
      %c0_57 = arith.constant 0 : index
      %325 = vector.load %arg4[%c0_56, %c0_57] : memref<16x128xf32, #tpu.memory_space<vmem>>, vector<16x128xf32>
      tpu.vector_store %arg4[%c0_56, %c0_57], %324 {strides = array<i32>} : memref<16x128xf32, #tpu.memory_space<vmem>>, vector<16x128xf32>,
    } else {
    }
    return
  }
  func.func @transform_0(%arg0: i32) -> (i32, i32) {
    %c0_i32 = arith.constant 0 : i32
    %c0_i32_0 = arith.constant 0 : i32
    return %arg0, %c0_i32 : i32, i32
  }
  func.func @transform_1(%arg0: i32) -> (i32, i32) {
    %c0_i32 = arith.constant 0 : i32
    %c0_i32_0 = arith.constant 0 : i32
    return %arg0, %c0_i32 : i32, i32
  }
  func.func @transform_2(%arg0: i32) -> (i32, i32) {
    %c0_i32 = arith.constant 0 : i32
    %c0_i32_0 = arith.constant 0 : i32
    return %arg0, %c0_i32 : i32, i32
  }
  func.func @transform_3(%arg0: i32) -> (i32, i32) {
    %c0_i32 = arith.constant 0 : i32
    %c0_i32_0 = arith.constant 0 : i32
    return %arg0, %c0_i32 : i32, i32
  }
}

</mosaic_0001>

<llo_original>
// kernel: tpu_custom_call.1
$region0: #{tpu_custom_call.1}
  #allocation0 [shape = 'u32[]', space=smem, size = 0x4, offset = 0x4, fixed_abs, tag = 'smem constant byte address 0x4 - core index']
  #allocation1 [shape = 'u32[144,128]{1,0:T(1,128)}', space=vmem, size = 0x12000, scoped, tag = 'internal scratch']
  %s0 = inlined_call_operand.hbm [shape: f32[16,128], index: 0, kind: input, shape index: {}]
  %s1 = inlined_call_operand.hbm [shape: f32[16,128], index: 1, kind: input, shape index: {}]
  %s2 = inlined_call_operand.hbm [shape: f32[16,128], index: 2, kind: input, shape index: {}]
  %s3 = inlined_call_operand.hbm [shape: f32[16,128], index: 3, kind: output, shape index: {}]
  %s4 = sld [smem:[#allocation0]]
  $region46: #{tpu_custom_call.1} parent=0
    _
  %s6 = ssub.s32 1, %s4
  %s7 = scalar_select 0, %s6, %s4
  $region1: #{tpu_custom_call.1} parent=0
    #allocation2 [shape = 'u8[8192]{0}', space=vmem, size = 0x2000, scoped, tag = 'input window, operand 0, single buffered']
    #allocation3 [shape = 's32[1]{0}', space=sflag, size = 0x4, scoped, tag = 'scoped memory for tpu_custom_call.1']
    #allocation4 [shape = 's32[1]{0}', space=sflag, size = 0x4, scoped, tag = 'scoped memory for tpu_custom_call.1']
    #allocation5 [shape = 'u8[8192]{0}', space=vmem, size = 0x2000, scoped, tag = 'input window, operand 1, single buffered']
    #allocation6 [shape = 's32[1]{0}', space=sflag, size = 0x4, scoped, tag = 'scoped memory for tpu_custom_call.1']
    #allocation7 [shape = 'u8[8192]{0}', space=vmem, size = 0x2000, scoped, tag = 'input window, operand 2, single buffered']
    #allocation8 [shape = 'u8[8192]{0}', space=vmem, size = 0x2000, scoped, tag = 'output window, operand 0, single buffered']
    %8 = vsyncpa [#allocation3], 0
    %9 = vsyncpa [#allocation6], 0
    %10 = vsyncpa [#allocation4], 0
    // Predicated region
    $region2: #{tpu_custom_call.1} parent=1 // pred_check
      _
    $region3: #{tpu_custom_call.1} parent=1 // pred_check_branch
      %12 = sbr.rel (0) target = $region5
    $region4: #{tpu_custom_call.1} parent=1 // pred_region
      %s14 = ssub.s32 256, 256
      %15 = vsyncadd [#allocation3], %s14
      %s16 = sshll.u32 [#allocation2], 4
      %s17 = int_to_ptr.vmem [resolvable:$true] %s16
      %22 = dma.hbm_to_vmem [thread:$0]  %s0, 256, %s17, [#allocation3], 128, 128, 8
    $region5: #{tpu_custom_call.1} parent=1 // pred_fallthru
      _
    // Predicated region
    $region6: #{tpu_custom_call.1} parent=1 // pred_check
      _
    $region7: #{tpu_custom_call.1} parent=1 // pred_check_branch
      %24 = sbr.rel (0) target = $region9
    $region8: #{tpu_custom_call.1} parent=1 // pred_region
      %s26 = ssub.s32 256, 256
      %27 = vsyncadd [#allocation6], %s26
      %s28 = sshll.u32 [#allocation5], 4
      %s29 = int_to_ptr.vmem [resolvable:$true] %s28
      %34 = dma.hbm_to_vmem [thread:$0]  %s1, 256, %s29, [#allocation6], 128, 128, 8
    $region9: #{tpu_custom_call.1} parent=1 // pred_fallthru
      _
    // Predicated region
    $region10: #{tpu_custom_call.1} parent=1 // pred_check
      _
    $region11: #{tpu_custom_call.1} parent=1 // pred_check_branch
      %36 = sbr.rel (0) target = $region13
    $region12: #{tpu_custom_call.1} parent=1 // pred_region
      %s38 = ssub.s32 256, 256
      %39 = vsyncadd [#allocation6], %s38
      %s40 = sshll.u32 [#allocation7], 4
      %s41 = int_to_ptr.vmem [resolvable:$true] %s40
      %46 = dma.hbm_to_vmem [thread:$0]  %s2, 256, %s41, [#allocation6], 128, 128, 8
    $region13: #{tpu_custom_call.1} parent=1 // pred_fallthru
      _
    // Predicated region
    $region14: #{tpu_custom_call.1} parent=1 // pred_check
      _
    $region15: #{tpu_custom_call.1} parent=1 // pred_check_branch
      %48 = sbr.rel (0) target = $region17
    $region16: #{tpu_custom_call.1} parent=1 // pred_region
      %49 = dma.done [#allocation3], 256
    $region17: #{tpu_custom_call.1} parent=1 // pred_fallthru
      _
    // Predicated region
    $region18: #{tpu_custom_call.1} parent=1 // pred_check
      _
    $region19: #{tpu_custom_call.1} parent=1 // pred_check_branch
      %51 = sbr.rel (0) target = $region21
    $region20: #{tpu_custom_call.1} parent=1 // pred_region
      %52 = dma.done [#allocation6], 256
    $region21: #{tpu_custom_call.1} parent=1 // pred_fallthru
      _
    // Predicated region
    $region22: #{tpu_custom_call.1} parent=1 // pred_check
      _
    $region23: #{tpu_custom_call.1} parent=1 // pred_check_branch
      %54 = sbr.rel (0) target = $region25
    $region24: #{tpu_custom_call.1} parent=1 // pred_region
      %55 = dma.done [#allocation6], 256
    $region25: #{tpu_custom_call.1} parent=1 // pred_fallthru
      _
    %v56 = vld [vmem:[#allocation2] sm:$0xff]
    %v57 = vld [vmem:[#allocation2 + $0x8] sm:$0xff]
    %v58 = vmin.f32 %v56, %v57
    %59 = vmin.xlane.f32.xlu0 %v58
    %v60 = vpop.xlane.xlu0 %59
    %v61 = vrot.slane %v60, 4
    %v62 = vmin.f32 %v60, %v61
    %v63 = vrot.slane %v62, 2
    %v64 = vmin.f32 %v62, %v63
    %v65 = vrot.slane %v64, 1
    %v66 = vmin.f32 %v64, %v65
    %s67 = vtos %v66
    %v68 = vmax.f32 %v56, %v57
    %69 = vmax.xlane.f32.xlu0 %v68
    %v70 = vpop.xlane.xlu0 %69
    %v71 = vrot.slane %v70, 4
    %v72 = vmax.f32 %v70, %v71
    %v73 = vrot.slane %v72, 2
    %v74 = vmax.f32 %v72, %v73
    %v75 = vrot.slane %v74, 1
    %v76 = vmax.f32 %v74, %v75
    %s77 = vtos %v76
    %p78 = scmp.le.f32.partialorder %s77, 12.0
    // Predicated region
    $region26: #{tpu_custom_call.1} parent=1 // pred_check
      %p79 = pneg %p78
    $region27: #{tpu_custom_call.1} parent=1 // pred_check_branch
      %81 = sbr.rel (%p79) target = $region29
    $region28: #{tpu_custom_call.1} parent=1 // pred_region
      %v82 = vld [vmem:[#allocation5] sm:$0xff]
      %v83 = vld [vmem:[#allocation5 + $0x8] sm:$0xff]
      %v84 = vsub.f32 0.0, %v56
      %v85 = vsub.f32 0.0, %v57
      %v86 = vmul.f32 %v84, 1.442695
      %v87 = vpow.pop %v86
      %v88 = vmul.f32 %v85, 1.442695
      %v89 = vpow.pop %v88
      %vm90 = vcmp.gt.f32.partialorder %v82, %v87
      %vm91 = vcmp.gt.f32.partialorder %v83, %v89
      %v92 = vsel %vm90, 1, 0
      %v93 = vsel %vm91, 1, 0
      %v94 = vcvt.s32.f32 %v92
      %v95 = vcvt.s32.f32 %v93
      %v96 = vadd.f32 %v94, 0.0
      %v97 = vadd.f32 %v95, 0.0
      %v98 = vmul.f32 %v87, %v56
      %v99 = vmul.f32 %v89, %v57
      %v100 = vadd.f32 %v87, %v98
      %v101 = vadd.f32 %v89, %v99
      %vm102 = vcmp.gt.f32.partialorder %v82, %v100
      %vm103 = vcmp.gt.f32.partialorder %v83, %v101
      %v104 = vsel %vm102, 1, 0
      %v105 = vsel %vm103, 1, 0
      %v106 = vcvt.s32.f32 %v104
      %v107 = vcvt.s32.f32 %v105
      %v108 = vadd.f32 %v96, %v106
      %v109 = vadd.f32 %v97, %v107
      %v110 = vmul.f32 %v56, 0.5
      %v111 = vmul.f32 %v57, 0.5
      %v112 = vmul.f32 %v98, %v110
      %v113 = vmul.f32 %v99, %v111
      %v114 = vadd.f32 %v100, %v112
      %v115 = vadd.f32 %v101, %v113
      %vm116 = vcmp.gt.f32.partialorder %v82, %v114
      %vm117 = vcmp.gt.f32.partialorder %v83, %v115
      %v118 = vsel %vm116, 1, 0
      %v119 = vsel %vm117, 1, 0
      %v120 = vcvt.s32.f32 %v118
      %v121 = vcvt.s32.f32 %v119
      %v122 = vadd.f32 %v108, %v120
      %v123 = vadd.f32 %v109, %v121
      %v124 = vmul.f32 %v56, 0.33333334
      %v125 = vmul.f32 %v57, 0.33333334
      %v126 = vmul.f32 %v112, %v124
      %v127 = vmul.f32 %v113, %v125
      %v128 = vadd.f32 %v114, %v126
      %v129 = vadd.f32 %v115, %v127
      %vm130 = vcmp.gt.f32.partialorder %v82, %v128
      %vm131 = vcmp.gt.f32.partialorder %v83, %v129
      %v132 = vsel %vm130, 1, 0
      %v133 = vsel %vm131, 1, 0
      %v134 = vcvt.s32.f32 %v132
      %v135 = vcvt.s32.f32 %v133
      %v136 = vadd.f32 %v122, %v134
      %v137 = vadd.f32 %v123, %v135
      %v138 = vmul.f32 %v56, 0.25
      %v139 = vmul.f32 %v57, 0.25
      %v140 = vmul.f32 %v126, %v138
      %v141 = vmul.f32 %v127, %v139
      %v142 = vadd.f32 %v128, %v140
      %v143 = vadd.f32 %v129, %v141
      %vm144 = vcmp.gt.f32.partialorder %v82, %v142
      %vm145 = vcmp.gt.f32.partialorder %v83, %v143
      %v146 = vsel %vm144, 1, 0
      %v147 = vsel %vm145, 1, 0
      %v148 = vcvt.s32.f32 %v146
      %v149 = vcvt.s32.f32 %v147
      %v150 = vadd.f32 %v136, %v148
      %v151 = vadd.f32 %v137, %v149
      %v152 = vmul.f32 %v56, 0.2
      %v153 = vmul.f32 %v57, 0.2
      %v154 = vmul.f32 %v140, %v152
      %v155 = vmul.f32 %v141, %v153
      %v156 = vadd.f32 %v142, %v154
      %v157 = vadd.f32 %v143, %v155
      %vm158 = vcmp.gt.f32.partialorder %v82, %v156
      %vm159 = vcmp.gt.f32.partialorder %v83, %v157
      %v160 = vsel %vm158, 1, 0
      %v161 = vsel %vm159, 1, 0
      %v162 = vcvt.s32.f32 %v160
      %v163 = vcvt.s32.f32 %v161
      %v164 = vadd.f32 %v150, %v162
      %v165 = vadd.f32 %v151, %v163
      %v166 = vmul.f32 %v56, 0.16666667
      %v167 = vmul.f32 %v57, 0.16666667
      %v168 = vmul.f32 %v154, %v166
      %v169 = vmul.f32 %v155, %v167
      %v170 = vadd.f32 %v156, %v168
      %v171 = vadd.f32 %v157, %v169
      %vm172 = vcmp.gt.f32.partialorder %v82, %v170
      %vm173 = vcmp.gt.f32.partialorder %v83, %v171
      %v174 = vsel %vm172, 1, 0
      %v175 = vsel %vm173, 1, 0
      %v176 = vcvt.s32.f32 %v174
      %v177 = vcvt.s32.f32 %v175
      %v178 = vadd.f32 %v164, %v176
      %v179 = vadd.f32 %v165, %v177
      %v180 = vmul.f32 %v56, 0.14285715
      %v181 = vmul.f32 %v57, 0.14285715
      %v182 = vmul.f32 %v168, %v180
      %v183 = vmul.f32 %v169, %v181
      %v184 = vadd.f32 %v170, %v182
      %v185 = vadd.f32 %v171, %v183
      %vm186 = vcmp.gt.f32.partialorder %v82, %v184
      %vm187 = vcmp.gt.f32.partialorder %v83, %v185
      %v188 = vsel %vm186, 1, 0
      %v189 = vsel %vm187, 1, 0
      %v190 = vcvt.s32.f32 %v188
      %v191 = vcvt.s32.f32 %v189
      %v192 = vadd.f32 %v178, %v190
      %v193 = vadd.f32 %v179, %v191
      %v194 = vmul.f32 %v56, 0.125
      %v195 = vmul.f32 %v57, 0.125
      %v196 = vmul.f32 %v182, %v194
      %v197 = vmul.f32 %v183, %v195
      %v198 = vadd.f32 %v184, %v196
      %v199 = vadd.f32 %v185, %v197
      %vm200 = vcmp.gt.f32.partialorder %v82, %v198
      %vm201 = vcmp.gt.f32.partialorder %v83, %v199
      %v202 = vsel %vm200, 1, 0
      %v203 = vsel %vm201, 1, 0
      %v204 = vcvt.s32.f32 %v202
      %v205 = vcvt.s32.f32 %v203
      %v206 = vadd.f32 %v192, %v204
      %v207 = vadd.f32 %v193, %v205
      %v208 = vmul.f32 %v56, 0.11111111
      %v209 = vmul.f32 %v57, 0.11111111
      %v210 = vmul.f32 %v196, %v208
      %v211 = vmul.f32 %v197, %v209
      %v212 = vadd.f32 %v198, %v210
      %v213 = vadd.f32 %v199, %v211
      %vm214 = vcmp.gt.f32.partialorder %v82, %v212
      %vm215 = vcmp.gt.f32.partialorder %v83, %v213
      %v216 = vsel %vm214, 1, 0
      %v217 = vsel %vm215, 1, 0
      %v218 = vcvt.s32.f32 %v216
      %v219 = vcvt.s32.f32 %v217
      %v220 = vadd.f32 %v206, %v218
      %v221 = vadd.f32 %v207, %v219
      %v222 = vmul.f32 %v56, 0.1
      %v223 = vmul.f32 %v57, 0.1
      %v224 = vmul.f32 %v210, %v222
      %v225 = vmul.f32 %v211, %v223
      %v226 = vadd.f32 %v212, %v224
      %v227 = vadd.f32 %v213, %v225
      %vm228 = vcmp.gt.f32.partialorder %v82, %v226
      %vm229 = vcmp.gt.f32.partialorder %v83, %v227
      %v230 = vsel %vm228, 1, 0
      %v231 = vsel %vm229, 1, 0
      %v232 = vcvt.s32.f32 %v230
      %v233 = vcvt.s32.f32 %v231
      %v234 = vadd.f32 %v220, %v232
      %v235 = vadd.f32 %v221, %v233
      %v236 = vmul.f32 %v56, 0.09090909
      %v237 = vmul.f32 %v57, 0.09090909
      %v238 = vmul.f32 %v224, %v236
      %v239 = vmul.f32 %v225, %v237
      %v240 = vadd.f32 %v226, %v238
      %v241 = vadd.f32 %v227, %v239
      %vm242 = vcmp.gt.f32.partialorder %v82, %v240
      %vm243 = vcmp.gt.f32.partialorder %v83, %v241
      %v244 = vsel %vm242, 1, 0
      %v245 = vsel %vm243, 1, 0
      %v246 = vcvt.s32.f32 %v244
      %v247 = vcvt.s32.f32 %v245
      %v248 = vadd.f32 %v234, %v246
      %v249 = vadd.f32 %v235, %v247
      %v250 = vmul.f32 %v56, 0.083333336
      %v251 = vmul.f32 %v57, 0.083333336
      %v252 = vmul.f32 %v238, %v250
      %v253 = vmul.f32 %v239, %v251
      %v254 = vadd.f32 %v240, %v252
      %v255 = vadd.f32 %v241, %v253
      %vm256 = vcmp.gt.f32.partialorder %v82, %v254
      %vm257 = vcmp.gt.f32.partialorder %v83, %v255
      %v258 = vsel %vm256, 1, 0
      %v259 = vsel %vm257, 1, 0
      %v260 = vcvt.s32.f32 %v258
      %v261 = vcvt.s32.f32 %v259
      %v262 = vadd.f32 %v248, %v260
      %v263 = vadd.f32 %v249, %v261
      %v264 = vmul.f32 %v56, 0.07692308
      %v265 = vmul.f32 %v57, 0.07692308
      %v266 = vmul.f32 %v252, %v264
      %v267 = vmul.f32 %v253, %v265
      %v268 = vadd.f32 %v254, %v266
      %v269 = vadd.f32 %v255, %v267
      %vm270 = vcmp.gt.f32.partialorder %v82, %v268
      %vm271 = vcmp.gt.f32.partialorder %v83, %v269
      %v272 = vsel %vm270, 1, 0
      %v273 = vsel %vm271, 1, 0
      %v274 = vcvt.s32.f32 %v272
      %v275 = vcvt.s32.f32 %v273
      %v276 = vadd.f32 %v262, %v274
      %v277 = vadd.f32 %v263, %v275
      %v278 = vmul.f32 %v56, 0.071428575
      %v279 = vmul.f32 %v57, 0.071428575
      %v280 = vmul.f32 %v266, %v278
      %v281 = vmul.f32 %v267, %v279
      %v282 = vadd.f32 %v268, %v280
      %v283 = vadd.f32 %v269, %v281
      %vm284 = vcmp.gt.f32.partialorder %v82, %v282
      %vm285 = vcmp.gt.f32.partialorder %v83, %v283
      %v286 = vsel %vm284, 1, 0
      %v287 = vsel %vm285, 1, 0
      %v288 = vcvt.s32.f32 %v286
      %v289 = vcvt.s32.f32 %v287
      %v290 = vadd.f32 %v276, %v288
      %v291 = vadd.f32 %v277, %v289
      %v292 = vmul.f32 %v56, 0.06666667
      %v293 = vmul.f32 %v57, 0.06666667
      %v294 = vmul.f32 %v280, %v292
      %v295 = vmul.f32 %v281, %v293
      %v296 = vadd.f32 %v282, %v294
      %v297 = vadd.f32 %v283, %v295
      %vm298 = vcmp.gt.f32.partialorder %v82, %v296
      %vm299 = vcmp.gt.f32.partialorder %v83, %v297
      %v300 = vsel %vm298, 1, 0
      %v301 = vsel %vm299, 1, 0
      %v302 = vcvt.s32.f32 %v300
      %v303 = vcvt.s32.f32 %v301
      %v304 = vadd.f32 %v290, %v302
      %v305 = vadd.f32 %v291, %v303
      %v306 = vmul.f32 %v56, 0.0625
      %v307 = vmul.f32 %v57, 0.0625
      %v308 = vmul.f32 %v294, %v306
      %v309 = vmul.f32 %v295, %v307
      %v310 = vadd.f32 %v296, %v308
      %v311 = vadd.f32 %v297, %v309
      %vm312 = vcmp.gt.f32.partialorder %v82, %v310
      %vm313 = vcmp.gt.f32.partialorder %v83, %v311
      %v314 = vsel %vm312, 1, 0
      %v315 = vsel %vm313, 1, 0
      %v316 = vcvt.s32.f32 %v314
      %v317 = vcvt.s32.f32 %v315
      %v318 = vadd.f32 %v304, %v316
      %v319 = vadd.f32 %v305, %v317
      %v320 = vmul.f32 %v56, 0.05882353
      %v321 = vmul.f32 %v57, 0.05882353
      %v322 = vmul.f32 %v308, %v320
      %v323 = vmul.f32 %v309, %v321
      %v324 = vadd.f32 %v310, %v322
      %v325 = vadd.f32 %v311, %v323
      %vm326 = vcmp.gt.f32.partialorder %v82, %v324
      %vm327 = vcmp.gt.f32.partialorder %v83, %v325
      %v328 = vsel %vm326, 1, 0
      %v329 = vsel %vm327, 1, 0
      %v330 = vcvt.s32.f32 %v328
      %v331 = vcvt.s32.f32 %v329
      %v332 = vadd.f32 %v318, %v330
      %v333 = vadd.f32 %v319, %v331
      %v334 = vmul.f32 %v56, 0.055555556
      %v335 = vmul.f32 %v57, 0.055555556
      %v336 = vmul.f32 %v322, %v334
      %v337 = vmul.f32 %v323, %v335
      %v338 = vadd.f32 %v324, %v336
      %v339 = vadd.f32 %v325, %v337
      %vm340 = vcmp.gt.f32.partialorder %v82, %v338
      %vm341 = vcmp.gt.f32.partialorder %v83, %v339
      %v342 = vsel %vm340, 1, 0
      %v343 = vsel %vm341, 1, 0
      %v344 = vcvt.s32.f32 %v342
      %v345 = vcvt.s32.f32 %v343
      %v346 = vadd.f32 %v332, %v344
      %v347 = vadd.f32 %v333, %v345
      %v348 = vmul.f32 %v56, 0.05263158
      %v349 = vmul.f32 %v57, 0.05263158
      %v350 = vmul.f32 %v336, %v348
      %v351 = vmul.f32 %v337, %v349
      %v352 = vadd.f32 %v338, %v350
      %v353 = vadd.f32 %v339, %v351
      %vm354 = vcmp.gt.f32.partialorder %v82, %v352
      %vm355 = vcmp.gt.f32.partialorder %v83, %v353
      %v356 = vsel %vm354, 1, 0
      %v357 = vsel %vm355, 1, 0
      %v358 = vcvt.s32.f32 %v356
      %v359 = vcvt.s32.f32 %v357
      %v360 = vadd.f32 %v346, %v358
      %v361 = vadd.f32 %v347, %v359
      %v362 = vmul.f32 %v56, 0.05
      %v363 = vmul.f32 %v57, 0.05
      %v364 = vmul.f32 %v350, %v362
      %v365 = vmul.f32 %v351, %v363
      %v366 = vadd.f32 %v352, %v364
      %v367 = vadd.f32 %v353, %v365
      %vm368 = vcmp.gt.f32.partialorder %v82, %v366
      %vm369 = vcmp.gt.f32.partialorder %v83, %v367
      %v370 = vsel %vm368, 1, 0
      %v371 = vsel %vm369, 1, 0
      %v372 = vcvt.s32.f32 %v370
      %v373 = vcvt.s32.f32 %v371
      %v374 = vadd.f32 %v360, %v372
      %v375 = vadd.f32 %v361, %v373
      %v376 = vmul.f32 %v56, 0.04761905
      %v377 = vmul.f32 %v57, 0.04761905
      %v378 = vmul.f32 %v364, %v376
      %v379 = vmul.f32 %v365, %v377
      %v380 = vadd.f32 %v366, %v378
      %v381 = vadd.f32 %v367, %v379
      %vm382 = vcmp.gt.f32.partialorder %v82, %v380
      %vm383 = vcmp.gt.f32.partialorder %v83, %v381
      %v384 = vsel %vm382, 1, 0
      %v385 = vsel %vm383, 1, 0
      %v386 = vcvt.s32.f32 %v384
      %v387 = vcvt.s32.f32 %v385
      %v388 = vadd.f32 %v374, %v386
      %v389 = vadd.f32 %v375, %v387
      %v390 = vmul.f32 %v56, 0.045454547
      %v391 = vmul.f32 %v57, 0.045454547
      %v392 = vmul.f32 %v378, %v390
      %v393 = vmul.f32 %v379, %v391
      %v394 = vadd.f32 %v380, %v392
      %v395 = vadd.f32 %v381, %v393
      %vm396 = vcmp.gt.f32.partialorder %v82, %v394
      %vm397 = vcmp.gt.f32.partialorder %v83, %v395
      %v398 = vsel %vm396, 1, 0
      %v399 = vsel %vm397, 1, 0
      %v400 = vcvt.s32.f32 %v398
      %v401 = vcvt.s32.f32 %v399
      %v402 = vadd.f32 %v388, %v400
      %v403 = vadd.f32 %v389, %v401
      %v404 = vmul.f32 %v56, 0.04347826
      %v405 = vmul.f32 %v57, 0.04347826
      %v406 = vmul.f32 %v392, %v404
      %v407 = vmul.f32 %v393, %v405
      %v408 = vadd.f32 %v394, %v406
      %v409 = vadd.f32 %v395, %v407
      %vm410 = vcmp.gt.f32.partialorder %v82, %v408
      %vm411 = vcmp.gt.f32.partialorder %v83, %v409
      %v412 = vsel %vm410, 1, 0
      %v413 = vsel %vm411, 1, 0
      %v414 = vcvt.s32.f32 %v412
      %v415 = vcvt.s32.f32 %v413
      %v416 = vadd.f32 %v402, %v414
      %v417 = vadd.f32 %v403, %v415
      %v418 = vmul.f32 %v56, 0.041666668
      %v419 = vmul.f32 %v57, 0.041666668
      %v420 = vmul.f32 %v406, %v418
      %v421 = vmul.f32 %v407, %v419
      %v422 = vadd.f32 %v408, %v420
      %v423 = vadd.f32 %v409, %v421
      %vm424 = vcmp.gt.f32.partialorder %v82, %v422
      %vm425 = vcmp.gt.f32.partialorder %v83, %v423
      %v426 = vsel %vm424, 1, 0
      %v427 = vsel %vm425, 1, 0
      %v428 = vcvt.s32.f32 %v426
      %v429 = vcvt.s32.f32 %v427
      %v430 = vadd.f32 %v416, %v428
      %v431 = vadd.f32 %v417, %v429
      %v432 = vmul.f32 %v56, 0.04
      %v433 = vmul.f32 %v57, 0.04
      %v434 = vmul.f32 %v420, %v432
      %v435 = vmul.f32 %v421, %v433
      %v436 = vadd.f32 %v422, %v434
      %v437 = vadd.f32 %v423, %v435
      %vm438 = vcmp.gt.f32.partialorder %v82, %v436
      %vm439 = vcmp.gt.f32.partialorder %v83, %v437
      %v440 = vsel %vm438, 1, 0
      %v441 = vsel %vm439, 1, 0
      %v442 = vcvt.s32.f32 %v440
      %v443 = vcvt.s32.f32 %v441
      %v444 = vadd.f32 %v430, %v442
      %v445 = vadd.f32 %v431, %v443
      %v446 = vmul.f32 %v56, 0.03846154
      %v447 = vmul.f32 %v57, 0.03846154
      %v448 = vmul.f32 %v434, %v446
      %v449 = vmul.f32 %v435, %v447
      %v450 = vadd.f32 %v436, %v448
      %v451 = vadd.f32 %v437, %v449
      %vm452 = vcmp.gt.f32.partialorder %v82, %v450
      %vm453 = vcmp.gt.f32.partialorder %v83, %v451
      %v454 = vsel %vm452, 1, 0
      %v455 = vsel %vm453, 1, 0
      %v456 = vcvt.s32.f32 %v454
      %v457 = vcvt.s32.f32 %v455
      %v458 = vadd.f32 %v444, %v456
      %v459 = vadd.f32 %v445, %v457
      %v460 = vmul.f32 %v56, 0.037037037
      %v461 = vmul.f32 %v57, 0.037037037
      %v462 = vmul.f32 %v448, %v460
      %v463 = vmul.f32 %v449, %v461
      %v464 = vadd.f32 %v450, %v462
      %v465 = vadd.f32 %v451, %v463
      %vm466 = vcmp.gt.f32.partialorder %v82, %v464
      %vm467 = vcmp.gt.f32.partialorder %v83, %v465
      %v468 = vsel %vm466, 1, 0
      %v469 = vsel %vm467, 1, 0
      %v470 = vcvt.s32.f32 %v468
      %v471 = vcvt.s32.f32 %v469
      %v472 = vadd.f32 %v458, %v470
      %v473 = vadd.f32 %v459, %v471
      %v474 = vmul.f32 %v56, 0.035714287
      %v475 = vmul.f32 %v57, 0.035714287
      %v476 = vmul.f32 %v462, %v474
      %v477 = vmul.f32 %v463, %v475
      %v478 = vadd.f32 %v464, %v476
      %v479 = vadd.f32 %v465, %v477
      %vm480 = vcmp.gt.f32.partialorder %v82, %v478
      %vm481 = vcmp.gt.f32.partialorder %v83, %v479
      %v482 = vsel %vm480, 1, 0
      %v483 = vsel %vm481, 1, 0
      %v484 = vcvt.s32.f32 %v482
      %v485 = vcvt.s32.f32 %v483
      %v486 = vadd.f32 %v472, %v484
      %v487 = vadd.f32 %v473, %v485
      %v488 = vmul.f32 %v56, 0.03448276
      %v489 = vmul.f32 %v57, 0.03448276
      %v490 = vmul.f32 %v476, %v488
      %v491 = vmul.f32 %v477, %v489
      %v492 = vadd.f32 %v478, %v490
      %v493 = vadd.f32 %v479, %v491
      %vm494 = vcmp.gt.f32.partialorder %v82, %v492
      %vm495 = vcmp.gt.f32.partialorder %v83, %v493
      %v496 = vsel %vm494, 1, 0
      %v497 = vsel %vm495, 1, 0
      %v498 = vcvt.s32.f32 %v496
      %v499 = vcvt.s32.f32 %v497
      %v500 = vadd.f32 %v486, %v498
      %v501 = vadd.f32 %v487, %v499
      %v502 = vmul.f32 %v56, 0.033333335
      %v503 = vmul.f32 %v57, 0.033333335
      %v504 = vmul.f32 %v490, %v502
      %v505 = vmul.f32 %v491, %v503
      %v506 = vadd.f32 %v492, %v504
      %v507 = vadd.f32 %v493, %v505
      %vm508 = vcmp.gt.f32.partialorder %v82, %v506
      %vm509 = vcmp.gt.f32.partialorder %v83, %v507
      %v510 = vsel %vm508, 1, 0
      %v511 = vsel %vm509, 1, 0
      %v512 = vcvt.s32.f32 %v510
      %v513 = vcvt.s32.f32 %v511
      %v514 = vadd.f32 %v500, %v512
      %v515 = vadd.f32 %v501, %v513
      %v516 = vmul.f32 %v56, 0.032258064
      %v517 = vmul.f32 %v57, 0.032258064
      %v518 = vmul.f32 %v504, %v516
      %v519 = vmul.f32 %v505, %v517
      %v520 = vadd.f32 %v506, %v518
      %v521 = vadd.f32 %v507, %v519
      %vm522 = vcmp.gt.f32.partialorder %v82, %v520
      %vm523 = vcmp.gt.f32.partialorder %v83, %v521
      %v524 = vsel %vm522, 1, 0
      %v525 = vsel %vm523, 1, 0
      %v526 = vcvt.s32.f32 %v524
      %v527 = vcvt.s32.f32 %v525
      %v528 = vadd.f32 %v514, %v526
      %v529 = vadd.f32 %v515, %v527
      %v530 = vmul.f32 %v56, 0.03125
      %v531 = vmul.f32 %v57, 0.03125
      %v532 = vmul.f32 %v518, %v530
      %v533 = vmul.f32 %v519, %v531
      %v534 = vadd.f32 %v520, %v532
      %v535 = vadd.f32 %v521, %v533
      %vm536 = vcmp.gt.f32.partialorder %v82, %v534
      %vm537 = vcmp.gt.f32.partialorder %v83, %v535
      %v538 = vsel %vm536, 1, 0
      %v539 = vsel %vm537, 1, 0
      %v540 = vcvt.s32.f32 %v538
      %v541 = vcvt.s32.f32 %v539
      %v542 = vadd.f32 %v528, %v540
      %v543 = vadd.f32 %v529, %v541
      %v544 = vmul.f32 %v56, 0.030303031
      %v545 = vmul.f32 %v57, 0.030303031
      %v546 = vmul.f32 %v532, %v544
      %v547 = vmul.f32 %v533, %v545
      %v548 = vadd.f32 %v534, %v546
      %v549 = vadd.f32 %v535, %v547
      %vm550 = vcmp.gt.f32.partialorder %v82, %v548
      %vm551 = vcmp.gt.f32.partialorder %v83, %v549
      %v552 = vsel %vm550, 1, 0
      %v553 = vsel %vm551, 1, 0
      %v554 = vcvt.s32.f32 %v552
      %v555 = vcvt.s32.f32 %v553
      %v556 = vadd.f32 %v542, %v554
      %v557 = vadd.f32 %v543, %v555
      %v558 = vmul.f32 %v56, 0.029411765
      %v559 = vmul.f32 %v57, 0.029411765
      %v560 = vmul.f32 %v546, %v558
      %v561 = vmul.f32 %v547, %v559
      %v562 = vadd.f32 %v548, %v560
      %v563 = vadd.f32 %v549, %v561
      %vm564 = vcmp.gt.f32.partialorder %v82, %v562
      %vm565 = vcmp.gt.f32.partialorder %v83, %v563
      %v566 = vsel %vm564, 1, 0
      %v567 = vsel %vm565, 1, 0
      %v568 = vcvt.s32.f32 %v566
      %v569 = vcvt.s32.f32 %v567
      %v570 = vadd.f32 %v556, %v568
      %v571 = vadd.f32 %v557, %v569
      %v572 = vmul.f32 %v56, 0.028571429
      %v573 = vmul.f32 %v57, 0.028571429
      %v574 = vmul.f32 %v560, %v572
      %v575 = vmul.f32 %v561, %v573
      %v576 = vadd.f32 %v562, %v574
      %v577 = vadd.f32 %v563, %v575
      %vm578 = vcmp.gt.f32.partialorder %v82, %v576
      %vm579 = vcmp.gt.f32.partialorder %v83, %v577
      %v580 = vsel %vm578, 1, 0
      %v581 = vsel %vm579, 1, 0
      %v582 = vcvt.s32.f32 %v580
      %v583 = vcvt.s32.f32 %v581
      %v584 = vadd.f32 %v570, %v582
      %v585 = vadd.f32 %v571, %v583
      %586 = vst [vmem:[#allocation8] sm:$0xff] %v584
      %587 = vst [vmem:[#allocation8 + $0x8] sm:$0xff] %v585
    $region29: #{tpu_custom_call.1} parent=1 // pred_fallthru
      _
    %p588 = scmp.gt.f32.partialorder %s67, 12.0
    // Predicated region
    $region30: #{tpu_custom_call.1} parent=1 // pred_check
      %p589 = pneg %p588
    $region31: #{tpu_custom_call.1} parent=1 // pred_check_branch
      %591 = sbr.rel (%p589) target = $region33
    $region32: #{tpu_custom_call.1} parent=1 // pred_region
      %v592 = vld [vmem:[#allocation7] sm:$0xff]
      %v593 = vld [vmem:[#allocation7 + $0x8] sm:$0xff]
      %v594 = vrsqrt.pop %v56
      %v595 = vmul.f32 %v56, %v594
      %vm596 = vcmp.eq.f32.partialorder %v56, inf
      %v597 = vsel %vm596, %v56, %v595
      %vm598 = vcmp.eq.f32.partialorder %v56, 0.0
      %v599 = vand.u32 %v56, 2147483648
      %v600 = vsel %vm598, %v599, %v597
      %v601 = vrsqrt.pop %v57
      %v602 = vmul.f32 %v57, %v601
      %vm603 = vcmp.eq.f32.partialorder %v57, inf
      %v604 = vsel %vm603, %v57, %v602
      %vm605 = vcmp.eq.f32.partialorder %v57, 0.0
      %v606 = vand.u32 %v57, 2147483648
      %v607 = vsel %vm605, %v606, %v604
      %v608 = vmul.f32 %v600, %v592
      %v609 = vmul.f32 %v607, %v593
      %v610 = vadd.f32 %v56, %v608
      %v611 = vadd.f32 %v57, %v609
      %v612 = vadd.f32 %v610, 0.5
      %v613 = vadd.f32 %v611, 0.5
      %v614 = vfloor.f32 %v612
      %v615 = vfloor.f32 %v613
      %v616 = vmax.f32 %v614, 0.0
      %v617 = vmax.f32 %v615, 0.0
      %618 = vst [vmem:[#allocation8] sm:$0xff] %v616
      %619 = vst [vmem:[#allocation8 + $0x8] sm:$0xff] %v617
    $region33: #{tpu_custom_call.1} parent=1 // pred_fallthru
      _
    %p620 = scmp.le.f32.partialorder %s67, 12.0
    %p621 = scmp.gt.f32.partialorder %s77, 12.0
    %p622 = pnand %p620, %p621
    %p623 = pneg %p622
    // Predicated region
    $region34: #{tpu_custom_call.1} parent=1 // pred_check
      _
    $region35: #{tpu_custom_call.1} parent=1 // pred_check_branch
      %625 = sbr.rel (%p622) target = $region37
    $region36: #{tpu_custom_call.1} parent=1 // pred_region
      %vm626 = vcmp.gt.f32.partialorder %v56, 12.0
      %vm627 = vcmp.gt.f32.partialorder %v57, 12.0
      %v628 = vld [vmem:[#allocation7] sm:$0xff]
      %v629 = vld [vmem:[#allocation7 + $0x8] sm:$0xff]
      %v630 = vrsqrt.pop %v56
      %v631 = vmul.f32 %v56, %v630
      %vm632 = vcmp.eq.f32.partialorder %v56, inf
      %v633 = vsel %vm632, %v56, %v631
      %vm634 = vcmp.eq.f32.partialorder %v56, 0.0
      %v635 = vand.u32 %v56, 2147483648
      %v636 = vsel %vm634, %v635, %v633
      %v637 = vrsqrt.pop %v57
      %v638 = vmul.f32 %v57, %v637
      %vm639 = vcmp.eq.f32.partialorder %v57, inf
      %v640 = vsel %vm639, %v57, %v638
      %vm641 = vcmp.eq.f32.partialorder %v57, 0.0
      %v642 = vand.u32 %v57, 2147483648
      %v643 = vsel %vm641, %v642, %v640
      %v644 = vmul.f32 %v636, %v628
      %v645 = vmul.f32 %v643, %v629
      %v646 = vadd.f32 %v56, %v644
      %v647 = vadd.f32 %v57, %v645
      %v648 = vadd.f32 %v646, 0.5
      %v649 = vadd.f32 %v647, 0.5
      %v650 = vfloor.f32 %v648
      %v651 = vfloor.f32 %v649
      %v652 = vmax.f32 %v650, 0.0
      %v653 = vmax.f32 %v651, 0.0
      %v654 = vld [vmem:[#allocation5] sm:$0xff]
      %v655 = vld [vmem:[#allocation5 + $0x8] sm:$0xff]
      %v656 = vsub.f32 0.0, %v56
      %v657 = vsub.f32 0.0, %v57
      %v658 = vmul.f32 %v656, 1.442695
      %v659 = vpow.pop %v658
      %v660 = vmul.f32 %v657, 1.442695
      %v661 = vpow.pop %v660
      %vm662 = vcmp.gt.f32.partialorder %v654, %v659
      %vm663 = vcmp.gt.f32.partialorder %v655, %v661
      %v664 = vsel %vm662, 1, 0
      %v665 = vsel %vm663, 1, 0
      %v666 = vcvt.s32.f32 %v664
      %v667 = vcvt.s32.f32 %v665
      %v668 = vadd.f32 %v666, 0.0
      %v669 = vadd.f32 %v667, 0.0
      %v670 = vmul.f32 %v659, %v56
      %v671 = vmul.f32 %v661, %v57
      %v672 = vadd.f32 %v659, %v670
      %v673 = vadd.f32 %v661, %v671
      %vm674 = vcmp.gt.f32.partialorder %v654, %v672
      %vm675 = vcmp.gt.f32.partialorder %v655, %v673
      %v676 = vsel %vm674, 1, 0
      %v677 = vsel %vm675, 1, 0
      %v678 = vcvt.s32.f32 %v676
      %v679 = vcvt.s32.f32 %v677
      %v680 = vadd.f32 %v668, %v678
      %v681 = vadd.f32 %v669, %v679
      %v682 = vmul.f32 %v56, 0.5
      %v683 = vmul.f32 %v57, 0.5
      %v684 = vmul.f32 %v670, %v682
      %v685 = vmul.f32 %v671, %v683
      %v686 = vadd.f32 %v672, %v684
      %v687 = vadd.f32 %v673, %v685
      %vm688 = vcmp.gt.f32.partialorder %v654, %v686
      %vm689 = vcmp.gt.f32.partialorder %v655, %v687
      %v690 = vsel %vm688, 1, 0
      %v691 = vsel %vm689, 1, 0
      %v692 = vcvt.s32.f32 %v690
      %v693 = vcvt.s32.f32 %v691
      %v694 = vadd.f32 %v680, %v692
      %v695 = vadd.f32 %v681, %v693
      %v696 = vmul.f32 %v56, 0.33333334
      %v697 = vmul.f32 %v57, 0.33333334
      %v698 = vmul.f32 %v684, %v696
      %v699 = vmul.f32 %v685, %v697
      %v700 = vadd.f32 %v686, %v698
      %v701 = vadd.f32 %v687, %v699
      %vm702 = vcmp.gt.f32.partialorder %v654, %v700
      %vm703 = vcmp.gt.f32.partialorder %v655, %v701
      %v704 = vsel %vm702, 1, 0
      %v705 = vsel %vm703, 1, 0
      %v706 = vcvt.s32.f32 %v704
      %v707 = vcvt.s32.f32 %v705
      %v708 = vadd.f32 %v694, %v706
      %v709 = vadd.f32 %v695, %v707
      %v710 = vmul.f32 %v56, 0.25
      %v711 = vmul.f32 %v57, 0.25
      %v712 = vmul.f32 %v698, %v710
      %v713 = vmul.f32 %v699, %v711
      %v714 = vadd.f32 %v700, %v712
      %v715 = vadd.f32 %v701, %v713
      %vm716 = vcmp.gt.f32.partialorder %v654, %v714
      %vm717 = vcmp.gt.f32.partialorder %v655, %v715
      %v718 = vsel %vm716, 1, 0
      %v719 = vsel %vm717, 1, 0
      %v720 = vcvt.s32.f32 %v718
      %v721 = vcvt.s32.f32 %v719
      %v722 = vadd.f32 %v708, %v720
      %v723 = vadd.f32 %v709, %v721
      %v724 = vmul.f32 %v56, 0.2
      %v725 = vmul.f32 %v57, 0.2
      %v726 = vmul.f32 %v712, %v724
      %v727 = vmul.f32 %v713, %v725
      %v728 = vadd.f32 %v714, %v726
      %v729 = vadd.f32 %v715, %v727
      %vm730 = vcmp.gt.f32.partialorder %v654, %v728
      %vm731 = vcmp.gt.f32.partialorder %v655, %v729
      %v732 = vsel %vm730, 1, 0
      %v733 = vsel %vm731, 1, 0
      %v734 = vcvt.s32.f32 %v732
      %v735 = vcvt.s32.f32 %v733
      %v736 = vadd.f32 %v722, %v734
      %v737 = vadd.f32 %v723, %v735
      %v738 = vmul.f32 %v56, 0.16666667
      %v739 = vmul.f32 %v57, 0.16666667
      %v740 = vmul.f32 %v726, %v738
      %v741 = vmul.f32 %v727, %v739
      %v742 = vadd.f32 %v728, %v740
      %v743 = vadd.f32 %v729, %v741
      %vm744 = vcmp.gt.f32.partialorder %v654, %v742
      %vm745 = vcmp.gt.f32.partialorder %v655, %v743
      %v746 = vsel %vm744, 1, 0
      %v747 = vsel %vm745, 1, 0
      %v748 = vcvt.s32.f32 %v746
      %v749 = vcvt.s32.f32 %v747
      %v750 = vadd.f32 %v736, %v748
      %v751 = vadd.f32 %v737, %v749
      %v752 = vmul.f32 %v56, 0.14285715
      %v753 = vmul.f32 %v57, 0.14285715
      %v754 = vmul.f32 %v740, %v752
      %v755 = vmul.f32 %v741, %v753
      %v756 = vadd.f32 %v742, %v754
      %v757 = vadd.f32 %v743, %v755
      %vm758 = vcmp.gt.f32.partialorder %v654, %v756
      %vm759 = vcmp.gt.f32.partialorder %v655, %v757
      %v760 = vsel %vm758, 1, 0
      %v761 = vsel %vm759, 1, 0
      %v762 = vcvt.s32.f32 %v760
      %v763 = vcvt.s32.f32 %v761
      %v764 = vadd.f32 %v750, %v762
      %v765 = vadd.f32 %v751, %v763
      %v766 = vmul.f32 %v56, 0.125
      %v767 = vmul.f32 %v57, 0.125
      %v768 = vmul.f32 %v754, %v766
      %v769 = vmul.f32 %v755, %v767
      %v770 = vadd.f32 %v756, %v768
      %v771 = vadd.f32 %v757, %v769
      %vm772 = vcmp.gt.f32.partialorder %v654, %v770
      %vm773 = vcmp.gt.f32.partialorder %v655, %v771
      %v774 = vsel %vm772, 1, 0
      %v775 = vsel %vm773, 1, 0
      %v776 = vcvt.s32.f32 %v774
      %v777 = vcvt.s32.f32 %v775
      %v778 = vadd.f32 %v764, %v776
      %v779 = vadd.f32 %v765, %v777
      %v780 = vmul.f32 %v56, 0.11111111
      %v781 = vmul.f32 %v57, 0.11111111
      %v782 = vmul.f32 %v768, %v780
      %v783 = vmul.f32 %v769, %v781
      %v784 = vadd.f32 %v770, %v782
      %v785 = vadd.f32 %v771, %v783
      %vm786 = vcmp.gt.f32.partialorder %v654, %v784
      %vm787 = vcmp.gt.f32.partialorder %v655, %v785
      %v788 = vsel %vm786, 1, 0
      %v789 = vsel %vm787, 1, 0
      %v790 = vcvt.s32.f32 %v788
      %v791 = vcvt.s32.f32 %v789
      %v792 = vadd.f32 %v778, %v790
      %v793 = vadd.f32 %v779, %v791
      %v794 = vmul.f32 %v56, 0.1
      %v795 = vmul.f32 %v57, 0.1
      %v796 = vmul.f32 %v782, %v794
      %v797 = vmul.f32 %v783, %v795
      %v798 = vadd.f32 %v784, %v796
      %v799 = vadd.f32 %v785, %v797
      %vm800 = vcmp.gt.f32.partialorder %v654, %v798
      %vm801 = vcmp.gt.f32.partialorder %v655, %v799
      %v802 = vsel %vm800, 1, 0
      %v803 = vsel %vm801, 1, 0
      %v804 = vcvt.s32.f32 %v802
      %v805 = vcvt.s32.f32 %v803
      %v806 = vadd.f32 %v792, %v804
      %v807 = vadd.f32 %v793, %v805
      %v808 = vmul.f32 %v56, 0.09090909
      %v809 = vmul.f32 %v57, 0.09090909
      %v810 = vmul.f32 %v796, %v808
      %v811 = vmul.f32 %v797, %v809
      %v812 = vadd.f32 %v798, %v810
      %v813 = vadd.f32 %v799, %v811
      %vm814 = vcmp.gt.f32.partialorder %v654, %v812
      %vm815 = vcmp.gt.f32.partialorder %v655, %v813
      %v816 = vsel %vm814, 1, 0
      %v817 = vsel %vm815, 1, 0
      %v818 = vcvt.s32.f32 %v816
      %v819 = vcvt.s32.f32 %v817
      %v820 = vadd.f32 %v806, %v818
      %v821 = vadd.f32 %v807, %v819
      %v822 = vmul.f32 %v56, 0.083333336
      %v823 = vmul.f32 %v57, 0.083333336
      %v824 = vmul.f32 %v810, %v822
      %v825 = vmul.f32 %v811, %v823
      %v826 = vadd.f32 %v812, %v824
      %v827 = vadd.f32 %v813, %v825
      %vm828 = vcmp.gt.f32.partialorder %v654, %v826
      %vm829 = vcmp.gt.f32.partialorder %v655, %v827
      %v830 = vsel %vm828, 1, 0
      %v831 = vsel %vm829, 1, 0
      %v832 = vcvt.s32.f32 %v830
      %v833 = vcvt.s32.f32 %v831
      %v834 = vadd.f32 %v820, %v832
      %v835 = vadd.f32 %v821, %v833
      %v836 = vmul.f32 %v56, 0.07692308
      %v837 = vmul.f32 %v57, 0.07692308
      %v838 = vmul.f32 %v824, %v836
      %v839 = vmul.f32 %v825, %v837
      %v840 = vadd.f32 %v826, %v838
      %v841 = vadd.f32 %v827, %v839
      %vm842 = vcmp.gt.f32.partialorder %v654, %v840
      %vm843 = vcmp.gt.f32.partialorder %v655, %v841
      %v844 = vsel %vm842, 1, 0
      %v845 = vsel %vm843, 1, 0
      %v846 = vcvt.s32.f32 %v844
      %v847 = vcvt.s32.f32 %v845
      %v848 = vadd.f32 %v834, %v846
      %v849 = vadd.f32 %v835, %v847
      %v850 = vmul.f32 %v56, 0.071428575
      %v851 = vmul.f32 %v57, 0.071428575
      %v852 = vmul.f32 %v838, %v850
      %v853 = vmul.f32 %v839, %v851
      %v854 = vadd.f32 %v840, %v852
      %v855 = vadd.f32 %v841, %v853
      %vm856 = vcmp.gt.f32.partialorder %v654, %v854
      %vm857 = vcmp.gt.f32.partialorder %v655, %v855
      %v858 = vsel %vm856, 1, 0
      %v859 = vsel %vm857, 1, 0
      %v860 = vcvt.s32.f32 %v858
      %v861 = vcvt.s32.f32 %v859
      %v862 = vadd.f32 %v848, %v860
      %v863 = vadd.f32 %v849, %v861
      %v864 = vmul.f32 %v56, 0.06666667
      %v865 = vmul.f32 %v57, 0.06666667
      %v866 = vmul.f32 %v852, %v864
      %v867 = vmul.f32 %v853, %v865
      %v868 = vadd.f32 %v854, %v866
      %v869 = vadd.f32 %v855, %v867
      %vm870 = vcmp.gt.f32.partialorder %v654, %v868
      %vm871 = vcmp.gt.f32.partialorder %v655, %v869
      %v872 = vsel %vm870, 1, 0
      %v873 = vsel %vm871, 1, 0
      %v874 = vcvt.s32.f32 %v872
      %v875 = vcvt.s32.f32 %v873
      %v876 = vadd.f32 %v862, %v874
      %v877 = vadd.f32 %v863, %v875
      %v878 = vmul.f32 %v56, 0.0625
      %v879 = vmul.f32 %v57, 0.0625
      %v880 = vmul.f32 %v866, %v878
      %v881 = vmul.f32 %v867, %v879
      %v882 = vadd.f32 %v868, %v880
      %v883 = vadd.f32 %v869, %v881
      %vm884 = vcmp.gt.f32.partialorder %v654, %v882
      %vm885 = vcmp.gt.f32.partialorder %v655, %v883
      %v886 = vsel %vm884, 1, 0
      %v887 = vsel %vm885, 1, 0
      %v888 = vcvt.s32.f32 %v886
      %v889 = vcvt.s32.f32 %v887
      %v890 = vadd.f32 %v876, %v888
      %v891 = vadd.f32 %v877, %v889
      %v892 = vmul.f32 %v56, 0.05882353
      %v893 = vmul.f32 %v57, 0.05882353
      %v894 = vmul.f32 %v880, %v892
      %v895 = vmul.f32 %v881, %v893
      %v896 = vadd.f32 %v882, %v894
      %v897 = vadd.f32 %v883, %v895
      %vm898 = vcmp.gt.f32.partialorder %v654, %v896
      %vm899 = vcmp.gt.f32.partialorder %v655, %v897
      %v900 = vsel %vm898, 1, 0
      %v901 = vsel %vm899, 1, 0
      %v902 = vcvt.s32.f32 %v900
      %v903 = vcvt.s32.f32 %v901
      %v904 = vadd.f32 %v890, %v902
      %v905 = vadd.f32 %v891, %v903
      %v906 = vmul.f32 %v56, 0.055555556
      %v907 = vmul.f32 %v57, 0.055555556
      %v908 = vmul.f32 %v894, %v906
      %v909 = vmul.f32 %v895, %v907
      %v910 = vadd.f32 %v896, %v908
      %v911 = vadd.f32 %v897, %v909
      %vm912 = vcmp.gt.f32.partialorder %v654, %v910
      %vm913 = vcmp.gt.f32.partialorder %v655, %v911
      %v914 = vsel %vm912, 1, 0
      %v915 = vsel %vm913, 1, 0
      %v916 = vcvt.s32.f32 %v914
      %v917 = vcvt.s32.f32 %v915
      %v918 = vadd.f32 %v904, %v916
      %v919 = vadd.f32 %v905, %v917
      %v920 = vmul.f32 %v56, 0.05263158
      %v921 = vmul.f32 %v57, 0.05263158
      %v922 = vmul.f32 %v908, %v920
      %v923 = vmul.f32 %v909, %v921
      %v924 = vadd.f32 %v910, %v922
      %v925 = vadd.f32 %v911, %v923
      %vm926 = vcmp.gt.f32.partialorder %v654, %v924
      %vm927 = vcmp.gt.f32.partialorder %v655, %v925
      %v928 = vsel %vm926, 1, 0
      %v929 = vsel %vm927, 1, 0
      %v930 = vcvt.s32.f32 %v928
      %v931 = vcvt.s32.f32 %v929
      %v932 = vadd.f32 %v918, %v930
      %v933 = vadd.f32 %v919, %v931
      %v934 = vmul.f32 %v56, 0.05
      %v935 = vmul.f32 %v57, 0.05
      %v936 = vmul.f32 %v922, %v934
      %v937 = vmul.f32 %v923, %v935
      %v938 = vadd.f32 %v924, %v936
      %v939 = vadd.f32 %v925, %v937
      %vm940 = vcmp.gt.f32.partialorder %v654, %v938
      %vm941 = vcmp.gt.f32.partialorder %v655, %v939
      %v942 = vsel %vm940, 1, 0
      %v943 = vsel %vm941, 1, 0
      %v944 = vcvt.s32.f32 %v942
      %v945 = vcvt.s32.f32 %v943
      %v946 = vadd.f32 %v932, %v944
      %v947 = vadd.f32 %v933, %v945
      %v948 = vmul.f32 %v56, 0.04761905
      %v949 = vmul.f32 %v57, 0.04761905
      %v950 = vmul.f32 %v936, %v948
      %v951 = vmul.f32 %v937, %v949
      %v952 = vadd.f32 %v938, %v950
      %v953 = vadd.f32 %v939, %v951
      %vm954 = vcmp.gt.f32.partialorder %v654, %v952
      %vm955 = vcmp.gt.f32.partialorder %v655, %v953
      %v956 = vsel %vm954, 1, 0
      %v957 = vsel %vm955, 1, 0
      %v958 = vcvt.s32.f32 %v956
      %v959 = vcvt.s32.f32 %v957
      %v960 = vadd.f32 %v946, %v958
      %v961 = vadd.f32 %v947, %v959
      %v962 = vmul.f32 %v56, 0.045454547
      %v963 = vmul.f32 %v57, 0.045454547
      %v964 = vmul.f32 %v950, %v962
      %v965 = vmul.f32 %v951, %v963
      %v966 = vadd.f32 %v952, %v964
      %v967 = vadd.f32 %v953, %v965
      %vm968 = vcmp.gt.f32.partialorder %v654, %v966
      %vm969 = vcmp.gt.f32.partialorder %v655, %v967
      %v970 = vsel %vm968, 1, 0
      %v971 = vsel %vm969, 1, 0
      %v972 = vcvt.s32.f32 %v970
      %v973 = vcvt.s32.f32 %v971
      %v974 = vadd.f32 %v960, %v972
      %v975 = vadd.f32 %v961, %v973
      %v976 = vmul.f32 %v56, 0.04347826
      %v977 = vmul.f32 %v57, 0.04347826
      %v978 = vmul.f32 %v964, %v976
      %v979 = vmul.f32 %v965, %v977
      %v980 = vadd.f32 %v966, %v978
      %v981 = vadd.f32 %v967, %v979
      %vm982 = vcmp.gt.f32.partialorder %v654, %v980
      %vm983 = vcmp.gt.f32.partialorder %v655, %v981
      %v984 = vsel %vm982, 1, 0
      %v985 = vsel %vm983, 1, 0
      %v986 = vcvt.s32.f32 %v984
      %v987 = vcvt.s32.f32 %v985
      %v988 = vadd.f32 %v974, %v986
      %v989 = vadd.f32 %v975, %v987
      %v990 = vmul.f32 %v56, 0.041666668
      %v991 = vmul.f32 %v57, 0.041666668
      %v992 = vmul.f32 %v978, %v990
      %v993 = vmul.f32 %v979, %v991
      %v994 = vadd.f32 %v980, %v992
      %v995 = vadd.f32 %v981, %v993
      %vm996 = vcmp.gt.f32.partialorder %v654, %v994
      %vm997 = vcmp.gt.f32.partialorder %v655, %v995
      %v998 = vsel %vm996, 1, 0
      %v999 = vsel %vm997, 1, 0
      %v1000 = vcvt.s32.f32 %v998
      %v1001 = vcvt.s32.f32 %v999
      %v1002 = vadd.f32 %v988, %v1000
      %v1003 = vadd.f32 %v989, %v1001
      %v1004 = vmul.f32 %v56, 0.04
      %v1005 = vmul.f32 %v57, 0.04
      %v1006 = vmul.f32 %v992, %v1004
      %v1007 = vmul.f32 %v993, %v1005
      %v1008 = vadd.f32 %v994, %v1006
      %v1009 = vadd.f32 %v995, %v1007
      %vm1010 = vcmp.gt.f32.partialorder %v654, %v1008
      %vm1011 = vcmp.gt.f32.partialorder %v655, %v1009
      %v1012 = vsel %vm1010, 1, 0
      %v1013 = vsel %vm1011, 1, 0
      %v1014 = vcvt.s32.f32 %v1012
      %v1015 = vcvt.s32.f32 %v1013
      %v1016 = vadd.f32 %v1002, %v1014
      %v1017 = vadd.f32 %v1003, %v1015
      %v1018 = vmul.f32 %v56, 0.03846154
      %v1019 = vmul.f32 %v57, 0.03846154
      %v1020 = vmul.f32 %v1006, %v1018
      %v1021 = vmul.f32 %v1007, %v1019
      %v1022 = vadd.f32 %v1008, %v1020
      %v1023 = vadd.f32 %v1009, %v1021
      %vm1024 = vcmp.gt.f32.partialorder %v654, %v1022
      %vm1025 = vcmp.gt.f32.partialorder %v655, %v1023
      %v1026 = vsel %vm1024, 1, 0
      %v1027 = vsel %vm1025, 1, 0
      %v1028 = vcvt.s32.f32 %v1026
      %v1029 = vcvt.s32.f32 %v1027
      %v1030 = vadd.f32 %v1016, %v1028
      %v1031 = vadd.f32 %v1017, %v1029
      %v1032 = vmul.f32 %v56, 0.037037037
      %v1033 = vmul.f32 %v57, 0.037037037
      %v1034 = vmul.f32 %v1020, %v1032
      %v1035 = vmul.f32 %v1021, %v1033
      %v1036 = vadd.f32 %v1022, %v1034
      %v1037 = vadd.f32 %v1023, %v1035
      %vm1038 = vcmp.gt.f32.partialorder %v654, %v1036
      %vm1039 = vcmp.gt.f32.partialorder %v655, %v1037
      %v1040 = vsel %vm1038, 1, 0
      %v1041 = vsel %vm1039, 1, 0
      %v1042 = vcvt.s32.f32 %v1040
      %v1043 = vcvt.s32.f32 %v1041
      %v1044 = vadd.f32 %v1030, %v1042
      %v1045 = vadd.f32 %v1031, %v1043
      %v1046 = vmul.f32 %v56, 0.035714287
      %v1047 = vmul.f32 %v57, 0.035714287
      %v1048 = vmul.f32 %v1034, %v1046
      %v1049 = vmul.f32 %v1035, %v1047
      %v1050 = vadd.f32 %v1036, %v1048
      %v1051 = vadd.f32 %v1037, %v1049
      %vm1052 = vcmp.gt.f32.partialorder %v654, %v1050
      %vm1053 = vcmp.gt.f32.partialorder %v655, %v1051
      %v1054 = vsel %vm1052, 1, 0
      %v1055 = vsel %vm1053, 1, 0
      %v1056 = vcvt.s32.f32 %v1054
      %v1057 = vcvt.s32.f32 %v1055
      %v1058 = vadd.f32 %v1044, %v1056
      %v1059 = vadd.f32 %v1045, %v1057
      %v1060 = vmul.f32 %v56, 0.03448276
      %v1061 = vmul.f32 %v57, 0.03448276
      %v1062 = vmul.f32 %v1048, %v1060
      %v1063 = vmul.f32 %v1049, %v1061
      %v1064 = vadd.f32 %v1050, %v1062
      %v1065 = vadd.f32 %v1051, %v1063
      %vm1066 = vcmp.gt.f32.partialorder %v654, %v1064
      %vm1067 = vcmp.gt.f32.partialorder %v655, %v1065
      %v1068 = vsel %vm1066, 1, 0
      %v1069 = vsel %vm1067, 1, 0
      %v1070 = vcvt.s32.f32 %v1068
      %v1071 = vcvt.s32.f32 %v1069
      %v1072 = vadd.f32 %v1058, %v1070
      %v1073 = vadd.f32 %v1059, %v1071
      %v1074 = vmul.f32 %v56, 0.033333335
      %v1075 = vmul.f32 %v57, 0.033333335
      %v1076 = vmul.f32 %v1062, %v1074
      %v1077 = vmul.f32 %v1063, %v1075
      %v1078 = vadd.f32 %v1064, %v1076
      %v1079 = vadd.f32 %v1065, %v1077
      %vm1080 = vcmp.gt.f32.partialorder %v654, %v1078
      %vm1081 = vcmp.gt.f32.partialorder %v655, %v1079
      %v1082 = vsel %vm1080, 1, 0
      %v1083 = vsel %vm1081, 1, 0
      %v1084 = vcvt.s32.f32 %v1082
      %v1085 = vcvt.s32.f32 %v1083
      %v1086 = vadd.f32 %v1072, %v1084
      %v1087 = vadd.f32 %v1073, %v1085
      %v1088 = vmul.f32 %v56, 0.032258064
      %v1089 = vmul.f32 %v57, 0.032258064
      %v1090 = vmul.f32 %v1076, %v1088
      %v1091 = vmul.f32 %v1077, %v1089
      %v1092 = vadd.f32 %v1078, %v1090
      %v1093 = vadd.f32 %v1079, %v1091
      %vm1094 = vcmp.gt.f32.partialorder %v654, %v1092
      %vm1095 = vcmp.gt.f32.partialorder %v655, %v1093
      %v1096 = vsel %vm1094, 1, 0
      %v1097 = vsel %vm1095, 1, 0
      %v1098 = vcvt.s32.f32 %v1096
      %v1099 = vcvt.s32.f32 %v1097
      %v1100 = vadd.f32 %v1086, %v1098
      %v1101 = vadd.f32 %v1087, %v1099
      %v1102 = vmul.f32 %v56, 0.03125
      %v1103 = vmul.f32 %v57, 0.03125
      %v1104 = vmul.f32 %v1090, %v1102
      %v1105 = vmul.f32 %v1091, %v1103
      %v1106 = vadd.f32 %v1092, %v1104
      %v1107 = vadd.f32 %v1093, %v1105
      %vm1108 = vcmp.gt.f32.partialorder %v654, %v1106
      %vm1109 = vcmp.gt.f32.partialorder %v655, %v1107
      %v1110 = vsel %vm1108, 1, 0
      %v1111 = vsel %vm1109, 1, 0
      %v1112 = vcvt.s32.f32 %v1110
      %v1113 = vcvt.s32.f32 %v1111
      %v1114 = vadd.f32 %v1100, %v1112
      %v1115 = vadd.f32 %v1101, %v1113
      %v1116 = vmul.f32 %v56, 0.030303031
      %v1117 = vmul.f32 %v57, 0.030303031
      %v1118 = vmul.f32 %v1104, %v1116
      %v1119 = vmul.f32 %v1105, %v1117
      %v1120 = vadd.f32 %v1106, %v1118
      %v1121 = vadd.f32 %v1107, %v1119
      %vm1122 = vcmp.gt.f32.partialorder %v654, %v1120
      %vm1123 = vcmp.gt.f32.partialorder %v655, %v1121
      %v1124 = vsel %vm1122, 1, 0
      %v1125 = vsel %vm1123, 1, 0
      %v1126 = vcvt.s32.f32 %v1124
      %v1127 = vcvt.s32.f32 %v1125
      %v1128 = vadd.f32 %v1114, %v1126
      %v1129 = vadd.f32 %v1115, %v1127
      %v1130 = vmul.f32 %v56, 0.029411765
      %v1131 = vmul.f32 %v57, 0.029411765
      %v1132 = vmul.f32 %v1118, %v1130
      %v1133 = vmul.f32 %v1119, %v1131
      %v1134 = vadd.f32 %v1120, %v1132
      %v1135 = vadd.f32 %v1121, %v1133
      %vm1136 = vcmp.gt.f32.partialorder %v654, %v1134
      %vm1137 = vcmp.gt.f32.partialorder %v655, %v1135
      %v1138 = vsel %vm1136, 1, 0
      %v1139 = vsel %vm1137, 1, 0
      %v1140 = vcvt.s32.f32 %v1138
      %v1141 = vcvt.s32.f32 %v1139
      %v1142 = vadd.f32 %v1128, %v1140
      %v1143 = vadd.f32 %v1129, %v1141
      %v1144 = vmul.f32 %v56, 0.028571429
      %v1145 = vmul.f32 %v57, 0.028571429
      %v1146 = vmul.f32 %v1132, %v1144
      %v1147 = vmul.f32 %v1133, %v1145
      %v1148 = vadd.f32 %v1134, %v1146
      %v1149 = vadd.f32 %v1135, %v1147
      %vm1150 = vcmp.gt.f32.partialorder %v654, %v1148
      %vm1151 = vcmp.gt.f32.partialorder %v655, %v1149
      %v1152 = vsel %vm1150, 1, 0
      %v1153 = vsel %vm1151, 1, 0
      %v1154 = vcvt.s32.f32 %v1152
      %v1155 = vcvt.s32.f32 %v1153
      %v1156 = vadd.f32 %v1142, %v1154
      %v1157 = vadd.f32 %v1143, %v1155
      %v1158 = vsel %vm626, %v652, %v1156
      %v1159 = vsel %vm627, %v653, %v1157
      %1160 = vst [vmem:[#allocation8] sm:$0xff] %v1158
      %1161 = vst [vmem:[#allocation8 + $0x8] sm:$0xff] %v1159
    $region37: #{tpu_custom_call.1} parent=1 // pred_fallthru
      _
    // Predicated region
    $region38: #{tpu_custom_call.1} parent=1 // pred_check
      _
    $region39: #{tpu_custom_call.1} parent=1 // pred_check_branch
      %1163 = sbr.rel (0) target = $region41
    $region40: #{tpu_custom_call.1} parent=1 // pred_region
      %s1165 = ssub.s32 256, 256
      %1166 = vsyncadd [#allocation4], %s1165
      %s1167 = sshll.u32 [#allocation8], 4
      %s1168 = int_to_ptr.vmem [resolvable:$true] %s1167
      %1173 = dma.vmem_to_hbm [thread:$0]  %s1168, 256, %s3, [#allocation4], 128, 128, 8
    $region41: #{tpu_custom_call.1} parent=1 // pred_fallthru
      _
    // Predicated region
    $region42: #{tpu_custom_call.1} parent=1 // pred_check
      _
    $region43: #{tpu_custom_call.1} parent=1 // pred_check_branch
      %1175 = sbr.rel (0) target = $region45
    $region44: #{tpu_custom_call.1} parent=1 // pred_region
      %1176 = dma.done [#allocation4], 256
    $region45: #{tpu_custom_call.1} parent=1 // pred_fallthru
      _
    %1177 = vsyncpa [#allocation3], 1
    %1178 = vsyncpa [#allocation6], 1
    %1179 = vsyncpa [#allocation4], 1

</llo_original>
